<compile_context>
chip_gen: v7x
topology: tpu7x:2x2x1
jax: 0.10.0
libtpu: 0.0.40
codegen_flags: <defaults>
</compile_context>

<pallas_src>
import math
import functools

import jax
import jax.numpy as jnp
from jax import lax
from jax.experimental import pallas as pl
from jax.experimental.pallas import tpu as pltpu


# ---------------------------------------------------------------------------
# Fused MHA kernel: one (batch) tile per grid step, all heads in one body.
# ---------------------------------------------------------------------------
def _mha_kernel(q_ref, k_ref, v_ref,
                wq_ref, bq_ref, wk_ref, bk_ref, wv_ref, bv_ref,
                wo_ref, bo_ref,
                o_ref, *, h, d_k):
    # x @ W.T with W stored PyTorch-style as (out, in): contract dim1 with dim1.
    contract = (((1,), (1,)), ((), ()))

    def proj(x_ref, w_ref, b_ref):
        y = lax.dot_general(x_ref[...], w_ref[...], contract,
                            preferred_element_type=jnp.float32)
        return y + b_ref[...]

    # Projections (all stay in VMEM / vregs; never leave the kernel).
    q = proj(q_ref, wq_ref, bq_ref) * jnp.float32(1.0 / math.sqrt(d_k))
    k = proj(k_ref, wk_ref, bk_ref)
    v = proj(v_ref, wv_ref, bv_ref)

    S = q.shape[0]
    q3 = q.reshape(S, h, d_k)
    k3 = k.reshape(S, h, d_k)
    v3 = v.reshape(S, h, d_k)

    # Batched-over-heads QK^T on the MXU (no explicit k transpose materialized).
    scores = jnp.einsum("qhd,khd->hqk", q3, k3,
                        preferred_element_type=jnp.float32)

    # TODO(synk): optional attention mask (masked_fill(mask==0, -1e9)) and
    # nn.Dropout(p=0.1) on p_attn are not wired in (mask=None / eval path).

    # Numerically-stable softmax; reciprocal on the EUP (+1 Newton step so the
    # result keeps full f32 accuracy).
    m = jnp.max(scores, axis=-1, keepdims=True)
    p = jnp.exp(scores - m)
    denom = jnp.sum(p, axis=-1, keepdims=True)
    inv = pl.reciprocal(denom, approx=True)
    inv = inv * (2.0 - denom * inv)
    p = p * inv

    # Attention-weighted values, merged back to (S, d_model) in-register.
    ctx = jnp.einsum("hqk,khd->qhd", p, v3,
                     preferred_element_type=jnp.float32)
    ctx2d = ctx.reshape(S, h * d_k)

    out = lax.dot_general(ctx2d, wo_ref[...], contract,
                          preferred_element_type=jnp.float32) + bo_ref[...]
    o_ref[...] = out.astype(o_ref.dtype)


# ---------------------------------------------------------------------------
# Wrapper: a single pallas_call for the whole MHA forward.
# ---------------------------------------------------------------------------
def multi_head_attention(params, query, key, value):
    B, S, d_model = query.shape
    h = params["h"]
    d_k = d_model // h

    act_spec = pl.BlockSpec((None, S, d_model), lambda b: (b, 0, 0))
    w_spec = pl.BlockSpec((d_model, d_model), lambda b: (0, 0))
    b_spec = pl.BlockSpec((1, d_model), lambda b: (0, 0))

    kernel = functools.partial(_mha_kernel, h=h, d_k=d_k)

    out = pl.pallas_call(
        kernel,
        out_shape=jax.ShapeDtypeStruct((B, S, d_model), query.dtype),
        grid=(B,),
        in_specs=[
            act_spec, act_spec, act_spec,          # query, key, value
            w_spec, b_spec,                        # wq, bq
            w_spec, b_spec,                        # wk, bk
            w_spec, b_spec,                        # wv, bv
            w_spec, b_spec,                        # wo, bo
        ],
        out_specs=act_spec,
        compiler_params=pltpu.CompilerParams(
            dimension_semantics=("parallel",)),
    )(
        query, key, value,
        params["wq"], params["bq"].reshape(1, d_model),
        params["wk"], params["bk"].reshape(1, d_model),
        params["wv"], params["bv"].reshape(1, d_model),
        params["wo"], params["bo"].reshape(1, d_model),
    )
    return out


# ---------------------------------------------------------------------------
# Pure-JAX reference for correctness checking
# ---------------------------------------------------------------------------
def reference(params, query, key, value):
    B, S, d_model = query.shape
    h = params["h"]
    d_k = d_model // h

    def lin(x, w, b):
        return x @ w.T + b

    def split(x):
        return x.reshape(B, S, h, d_k).transpose(0, 2, 1, 3)

    q = split(lin(query, params["wq"], params["bq"]))
    k = split(lin(key, params["wk"], params["bk"]))
    v = split(lin(value, params["wv"], params["bv"]))
    scores = jnp.einsum("bhqd,bhkd->bhqk", q, k) / math.sqrt(d_k)
    p = jax.nn.softmax(scores, axis=-1)
    ctx = jnp.einsum("bhqk,bhkd->bhqd", p, v)
    x = ctx.transpose(0, 2, 1, 3).reshape(B, S, d_model)
    return lin(x, params["wo"], params["bo"])


# ---------------------------------------------------------------------------
# Main
# ---------------------------------------------------------------------------
if __name__ == "__main__":
    B, S, d_model, h = 2, 8, 32, 4
    root = jax.random.PRNGKey(0)
    ks = jax.random.split(root, 12)

    def lin_init(kw, kb, n_out, n_in):
        w = jax.random.normal(kw, (n_out, n_in), jnp.float32) * 0.02
        b = jax.random.normal(kb, (n_out,), jnp.float32) * 0.02
        return w, b

    wq, bq = lin_init(ks[0], ks[1], d_model, d_model)
    wk, bk = lin_init(ks[2], ks[3], d_model, d_model)
    wv, bv = lin_init(ks[4], ks[5], d_model, d_model)
    wo, bo = lin_init(ks[6], ks[7], d_model, d_model)
    params = dict(h=h, wq=wq, bq=bq, wk=wk, bk=bk, wv=wv, bv=bv, wo=wo, bo=bo)

    query = jax.random.normal(ks[8], (B, S, d_model), jnp.float32)
    key_in = jax.random.normal(ks[9], (B, S, d_model), jnp.float32)
    value = jax.random.normal(ks[10], (B, S, d_model), jnp.float32)

    out = multi_head_attention(params, query, key_in, value)
    out = jax.block_until_ready(out)

    ref = reference(params, query, key_in, value)
    assert out.shape == (B, S, d_model)
    assert jnp.allclose(out, ref, atol=1e-4, rtol=1e-4), "mismatch vs reference"

    print("KERNEL_OK")
</pallas_src>

<mosaic_0001>
module attributes {stable_mosaic.version = 11 : i64} {
  func.func @_mha_kernel(%arg0: i32, %arg1: memref<1x8x32xf32, #tpu.memory_space<vmem>>, %arg2: memref<1x8x32xf32, #tpu.memory_space<vmem>>, %arg3: memref<1x8x32xf32, #tpu.memory_space<vmem>>, %arg4: memref<32x32xf32, #tpu.memory_space<vmem>>, %arg5: memref<1x32xf32, #tpu.memory_space<vmem>>, %arg6: memref<32x32xf32, #tpu.memory_space<vmem>>, %arg7: memref<1x32xf32, #tpu.memory_space<vmem>>, %arg8: memref<32x32xf32, #tpu.memory_space<vmem>>, %arg9: memref<1x32xf32, #tpu.memory_space<vmem>>, %arg10: memref<32x32xf32, #tpu.memory_space<vmem>>, %arg11: memref<1x32xf32, #tpu.memory_space<vmem>>, %arg12: memref<1x8x32xf32, #tpu.memory_space<vmem>>) attributes {dimension_semantics = [#tpu.dimension_semantics<parallel>], iteration_bounds = array<i64: 2>, scalar_prefetch = 0 : i64, scratch_operands = 0 : i64, tpu.core_type = #tpu.core_type<tc>, window_params = [{transform_indices = @transform_0, window_bounds = array<i64: 1, 8, 32>}, {transform_indices = @transform_1, window_bounds = array<i64: 1, 8, 32>}, {transform_indices = @transform_2, window_bounds = array<i64: 1, 8, 32>}, {pipeline_mode = #tpu.pipeline_mode<synchronous>, transform_indices = @transform_3, window_bounds = array<i64: 32, 32>}, {pipeline_mode = #tpu.pipeline_mode<synchronous>, transform_indices = @transform_4, window_bounds = array<i64: 1, 32>}, {pipeline_mode = #tpu.pipeline_mode<synchronous>, transform_indices = @transform_5, window_bounds = array<i64: 32, 32>}, {pipeline_mode = #tpu.pipeline_mode<synchronous>, transform_indices = @transform_6, window_bounds = array<i64: 1, 32>}, {pipeline_mode = #tpu.pipeline_mode<synchronous>, transform_indices = @transform_7, window_bounds = array<i64: 32, 32>}, {pipeline_mode = #tpu.pipeline_mode<synchronous>, transform_indices = @transform_8, window_bounds = array<i64: 1, 32>}, {pipeline_mode = #tpu.pipeline_mode<synchronous>, transform_indices = @transform_9, window_bounds = array<i64: 32, 32>}, {pipeline_mode = #tpu.pipeline_mode<synchronous>, transform_indices = @transform_10, window_bounds = array<i64: 1, 32>}, {transform_indices = @transform_11, window_bounds = array<i64: 1, 8, 32>}]} {
    %c0 = arith.constant 0 : index
    %c0_0 = arith.constant 0 : index
    %c0_1 = arith.constant 0 : index
    %0 = vector.load %arg1[%c0, %c0_0, %c0_1] : memref<1x8x32xf32, #tpu.memory_space<vmem>>, vector<1x8x32xf32>
    %1 = vector.shape_cast %0 : vector<1x8x32xf32> to vector<8x32xf32>
    %c0_2 = arith.constant 0 : index
    %c0_3 = arith.constant 0 : index
    %2 = vector.load %arg4[%c0_2, %c0_3] : memref<32x32xf32, #tpu.memory_space<vmem>>, vector<32x32xf32>
    %cst = arith.constant dense<0.000000e+00> : vector<8x32xf32>
    %3 = tpu.matmul %1, %2, %cst {dimension_numbers = #tpu.dot_dimension_numbers<[1], [1], [0], [0], [0, 0, 1, 0], [], []>} : vector<8x32xf32>, vector<32x32xf32>, vector<8x32xf32> -> vector<8x32xf32>
    %c0_4 = arith.constant 0 : index
    %c0_5 = arith.constant 0 : index
    %4 = vector.load %arg5[%c0_4, %c0_5] : memref<1x32xf32, #tpu.memory_space<vmem>>, vector<1x32xf32>
    %5 = vector.broadcast %4 : vector<1x32xf32> to vector<8x32xf32>
    %6 = arith.addf %3, %5 : vector<8x32xf32>
    %cst_6 = arith.constant 0.353553385 : f32
    %7 = vector.broadcast %cst_6 : f32 to vector<8x32xf32>
    %8 = arith.mulf %6, %7 : vector<8x32xf32>
    %c0_7 = arith.constant 0 : index
    %c0_8 = arith.constant 0 : index
    %c0_9 = arith.constant 0 : index
    %9 = vector.load %arg2[%c0_7, %c0_8, %c0_9] : memref<1x8x32xf32, #tpu.memory_space<vmem>>, vector<1x8x32xf32>
    %10 = vector.shape_cast %9 : vector<1x8x32xf32> to vector<8x32xf32>
    %c0_10 = arith.constant 0 : index
    %c0_11 = arith.constant 0 : index
    %11 = vector.load %arg6[%c0_10, %c0_11] : memref<32x32xf32, #tpu.memory_space<vmem>>, vector<32x32xf32>
    %cst_12 = arith.constant dense<0.000000e+00> : vector<8x32xf32>
    %12 = tpu.matmul %10, %11, %cst_12 {dimension_numbers = #tpu.dot_dimension_numbers<[1], [1], [0], [0], [0, 0, 1, 0], [], []>} : vector<8x32xf32>, vector<32x32xf32>, vector<8x32xf32> -> vector<8x32xf32>
    %c0_13 = arith.constant 0 : index
    %c0_14 = arith.constant 0 : index
    %13 = vector.load %arg7[%c0_13, %c0_14] : memref<1x32xf32, #tpu.memory_space<vmem>>, vector<1x32xf32>
    %14 = vector.broadcast %13 : vector<1x32xf32> to vector<8x32xf32>
    %15 = arith.addf %12, %14 : vector<8x32xf32>
    %c0_15 = arith.constant 0 : index
    %c0_16 = arith.constant 0 : index
    %c0_17 = arith.constant 0 : index
    %16 = vector.load %arg3[%c0_15, %c0_16, %c0_17] : memref<1x8x32xf32, #tpu.memory_space<vmem>>, vector<1x8x32xf32>
    %17 = vector.shape_cast %16 : vector<1x8x32xf32> to vector<8x32xf32>
    %c0_18 = arith.constant 0 : index
    %c0_19 = arith.constant 0 : index
    %18 = vector.load %arg8[%c0_18, %c0_19] : memref<32x32xf32, #tpu.memory_space<vmem>>, vector<32x32xf32>
    %cst_20 = arith.constant dense<0.000000e+00> : vector<8x32xf32>
    %19 = tpu.matmul %17, %18, %cst_20 {dimension_numbers = #tpu.dot_dimension_numbers<[1], [1], [0], [0], [0, 0, 1, 0], [], []>} : vector<8x32xf32>, vector<32x32xf32>, vector<8x32xf32> -> vector<8x32xf32>
    %c0_21 = arith.constant 0 : index
    %c0_22 = arith.constant 0 : index
    %20 = vector.load %arg9[%c0_21, %c0_22] : memref<1x32xf32, #tpu.memory_space<vmem>>, vector<1x32xf32>
    %21 = vector.broadcast %20 : vector<1x32xf32> to vector<8x32xf32>
    %22 = arith.addf %19, %21 : vector<8x32xf32>
    %23 = vector.shape_cast %8 : vector<8x32xf32> to vector<8x4x8xf32>
    %24 = vector.shape_cast %15 : vector<8x32xf32> to vector<8x4x8xf32>
    %25 = vector.shape_cast %22 : vector<8x32xf32> to vector<8x4x8xf32>
    "tpu.trace_start"() <{level = 10 : i32, message = "qhd,khd->hqk"}> : () -> ()
    %cst_23 = arith.constant dense<0.000000e+00> : vector<4x8x8xf32>
    %26 = tpu.matmul %23, %24, %cst_23 {dimension_numbers = #tpu.dot_dimension_numbers<[2], [2], [0], [0], [0, 1, 0, 0, 1, 0], [1], [1]>} : vector<8x4x8xf32>, vector<8x4x8xf32>, vector<4x8x8xf32> -> vector<4x8x8xf32>
    "tpu.trace_stop"() : () -> ()
    %cst_24 = arith.constant dense<0xFF800000> : vector<4x8xf32>
    %27 = vector.multi_reduction <maximumf>, %26, %cst_24 [2] : vector<4x8x8xf32> to vector<4x8xf32>
    %28 = vector.shape_cast %27 : vector<4x8xf32> to vector<4x8x1xf32>
    %29 = vector.broadcast %28 : vector<4x8x1xf32> to vector<4x8x8xf32>
    %30 = arith.subf %26, %29 : vector<4x8x8xf32>
    %31 = math.exp %30 : vector<4x8x8xf32>
    %cst_25 = arith.constant dense<0.000000e+00> : vector<4x8xf32>
    %32 = vector.multi_reduction <add>, %31, %cst_25 [2] : vector<4x8x8xf32> to vector<4x8xf32>
    %33 = vector.shape_cast %32 : vector<4x8xf32> to vector<4x8x1xf32>
    %34 = tpu.reciprocal %33 {approx = true} : vector<4x8x1xf32> -> vector<4x8x1xf32>
    %35 = arith.mulf %33, %34 : vector<4x8x1xf32>
    %cst_26 = arith.constant 2.000000e+00 : f32
    %36 = vector.broadcast %cst_26 : f32 to vector<4x8x1xf32>
    %37 = arith.subf %36, %35 : vector<4x8x1xf32>
    %38 = arith.mulf %34, %37 : vector<4x8x1xf32>
    %39 = vector.broadcast %38 : vector<4x8x1xf32> to vector<4x8x8xf32>
    %40 = arith.mulf %31, %39 : vector<4x8x8xf32>
    "tpu.trace_start"() <{level = 10 : i32, message = "hqk,khd->qhd"}> : () -> ()
    %cst_27 = arith.constant dense<0.000000e+00> : vector<4x8x8xf32>
    %41 = tpu.matmul %25, %40, %cst_27 {dimension_numbers = #tpu.dot_dimension_numbers<[0], [2], [2], [1], [0, 1, 0, 2, 1, 1], [1], [0]>} : vector<8x4x8xf32>, vector<4x8x8xf32>, vector<4x8x8xf32> -> vector<4x8x8xf32>
    %42 = tpu.transpose %41, [2, 0, 1] : vector<4x8x8xf32> -> vector<8x4x8xf32>
    "tpu.trace_stop"() : () -> ()
    %43 = vector.shape_cast %42 : vector<8x4x8xf32> to vector<8x32xf32>
    %c0_28 = arith.constant 0 : index
    %c0_29 = arith.constant 0 : index
    %44 = vector.load %arg10[%c0_28, %c0_29] : memref<32x32xf32, #tpu.memory_space<vmem>>, vector<32x32xf32>
    %cst_30 = arith.constant dense<0.000000e+00> : vector<8x32xf32>
    %45 = tpu.matmul %43, %44, %cst_30 {dimension_numbers = #tpu.dot_dimension_numbers<[1], [1], [0], [0], [0, 0, 1, 0], [], []>} : vector<8x32xf32>, vector<32x32xf32>, vector<8x32xf32> -> vector<8x32xf32>
    %c0_31 = arith.constant 0 : index
    %c0_32 = arith.constant 0 : index
    %46 = vector.load %arg11[%c0_31, %c0_32] : memref<1x32xf32, #tpu.memory_space<vmem>>, vector<1x32xf32>
    %47 = vector.broadcast %46 : vector<1x32xf32> to vector<8x32xf32>
    %48 = arith.addf %45, %47 : vector<8x32xf32>
    %c0_33 = arith.constant 0 : index
    %c0_34 = arith.constant 0 : index
    %c0_35 = arith.constant 0 : index
    %49 = vector.load %arg12[%c0_33, %c0_34, %c0_35] : memref<1x8x32xf32, #tpu.memory_space<vmem>>, vector<1x8x32xf32>
    %50 = vector.shape_cast %49 : vector<1x8x32xf32> to vector<8x32xf32>
    %51 = vector.shape_cast %48 : vector<8x32xf32> to vector<1x8x32xf32>
    tpu.vector_store %arg12[%c0_33, %c0_34, %c0_35], %51 {strides = array<i32>} : memref<1x8x32xf32, #tpu.memory_space<vmem>>, vector<1x8x32xf32>,
    return
  }
  func.func @transform_0(%arg0: i32) -> (i32, i32, i32) {
    %c0_i32 = arith.constant 0 : i32
    %c0_i32_0 = arith.constant 0 : i32
    %c0_i32_1 = arith.constant 0 : i32
    return %arg0, %c0_i32, %c0_i32_0 : i32, i32, i32
  }
  func.func @transform_1(%arg0: i32) -> (i32, i32, i32) {
    %c0_i32 = arith.constant 0 : i32
    %c0_i32_0 = arith.constant 0 : i32
    %c0_i32_1 = arith.constant 0 : i32
    return %arg0, %c0_i32, %c0_i32_0 : i32, i32, i32
  }
  func.func @transform_2(%arg0: i32) -> (i32, i32, i32) {
    %c0_i32 = arith.constant 0 : i32
    %c0_i32_0 = arith.constant 0 : i32
    %c0_i32_1 = arith.constant 0 : i32
    return %arg0, %c0_i32, %c0_i32_0 : i32, i32, i32
  }
  func.func @transform_3(%arg0: i32) -> (i32, i32) {
    %c0_i32 = arith.constant 0 : i32
    %c0_i32_0 = arith.constant 0 : i32
    %c0_i32_1 = arith.constant 0 : i32
    return %c0_i32, %c0_i32_0 : i32, i32
  }
  func.func @transform_4(%arg0: i32) -> (i32, i32) {
    %c0_i32 = arith.constant 0 : i32
    %c0_i32_0 = arith.constant 0 : i32
    %c0_i32_1 = arith.constant 0 : i32
    return %c0_i32, %c0_i32_0 : i32, i32
  }
  func.func @transform_5(%arg0: i32) -> (i32, i32) {
    %c0_i32 = arith.constant 0 : i32
    %c0_i32_0 = arith.constant 0 : i32
    %c0_i32_1 = arith.constant 0 : i32
    return %c0_i32, %c0_i32_0 : i32, i32
  }
  func.func @transform_6(%arg0: i32) -> (i32, i32) {
    %c0_i32 = arith.constant 0 : i32
    %c0_i32_0 = arith.constant 0 : i32
    %c0_i32_1 = arith.constant 0 : i32
    return %c0_i32, %c0_i32_0 : i32, i32
  }
  func.func @transform_7(%arg0: i32) -> (i32, i32) {
    %c0_i32 = arith.constant 0 : i32
    %c0_i32_0 = arith.constant 0 : i32
    %c0_i32_1 = arith.constant 0 : i32
    return %c0_i32, %c0_i32_0 : i32, i32
  }
  func.func @transform_8(%arg0: i32) -> (i32, i32) {
    %c0_i32 = arith.constant 0 : i32
    %c0_i32_0 = arith.constant 0 : i32
    %c0_i32_1 = arith.constant 0 : i32
    return %c0_i32, %c0_i32_0 : i32, i32
  }
  func.func @transform_9(%arg0: i32) -> (i32, i32) {
    %c0_i32 = arith.constant 0 : i32
    %c0_i32_0 = arith.constant 0 : i32
    %c0_i32_1 = arith.constant 0 : i32
    return %c0_i32, %c0_i32_0 : i32, i32
  }
  func.func @transform_10(%arg0: i32) -> (i32, i32) {
    %c0_i32 = arith.constant 0 : i32
    %c0_i32_0 = arith.constant 0 : i32
    %c0_i32_1 = arith.constant 0 : i32
    return %c0_i32, %c0_i32_0 : i32, i32
  }
  func.func @transform_11(%arg0: i32) -> (i32, i32, i32) {
    %c0_i32 = arith.constant 0 : i32
    %c0_i32_0 = arith.constant 0 : i32
    %c0_i32_1 = arith.constant 0 : i32
    return %arg0, %c0_i32, %c0_i32_0 : i32, i32, i32
  }
}

</mosaic_0001>

<llo_original>
// kernel: tpu_custom_call.1
$region0: #{tpu_custom_call.1}
  #allocation0 [shape = 'u32[]', space=smem, size = 0x4, offset = 0x4, fixed_abs, tag = 'smem constant byte address 0x4 - core index']
  #allocation1 [shape = 'u32[144,128]{1,0:T(1,128)}', space=vmem, size = 0x12000, scoped, tag = 'internal scratch']
  %s0 = inlined_call_operand.hbm [shape: f32[2,8,32], index: 0, kind: input, shape index: {}]
  %s1 = inlined_call_operand.hbm [shape: f32[2,8,32], index: 1, kind: input, shape index: {}]
  %s2 = inlined_call_operand.hbm [shape: f32[2,8,32], index: 2, kind: input, shape index: {}]
  %s3 = inlined_call_operand.hbm [shape: f32[32,32], index: 3, kind: input, shape index: {}]
  %s4 = inlined_call_operand.vmem [shape: f32[1,32], index: 4, kind: input, shape index: {}]
  %s5 = inlined_call_operand.hbm [shape: f32[32,32], index: 5, kind: input, shape index: {}]
  %s6 = inlined_call_operand.vmem [shape: f32[1,32], index: 6, kind: input, shape index: {}]
  %s7 = inlined_call_operand.hbm [shape: f32[32,32], index: 7, kind: input, shape index: {}]
  %s8 = inlined_call_operand.hbm [shape: f32[1,32], index: 8, kind: input, shape index: {}]
  %s9 = inlined_call_operand.vmem [shape: f32[32,32], index: 9, kind: input, shape index: {}]
  %s10 = inlined_call_operand.vmem [shape: f32[1,32], index: 10, kind: input, shape index: {}]
  %s11 = inlined_call_operand.hbm [shape: f32[2,8,32], index: 11, kind: output, shape index: {}]
  %s12 = sld [smem:[#allocation0]]
  $region105: #{tpu_custom_call.1} parent=0
    _
  %s14 = ssub.s32 1, %s12
  %s15 = scalar_select 0, %s14, %s12
  $region1: #{tpu_custom_call.1} parent=0
    #allocation2 [shape = 'u8[8192]{0}', space=vmem, size = 0x2000, scoped, tag = 'input window, operand 0']
    #allocation3 [shape = 's32[2]{0}', space=sflag, size = 0x8, scoped, tag = 'scoped memory for tpu_custom_call.1']
    #allocation4 [shape = 's32[2]{0}', space=sflag, size = 0x8, scoped, tag = 'scoped memory for tpu_custom_call.1']
    #allocation5 [shape = 'u8[8192]{0}', space=vmem, size = 0x2000, scoped, tag = 'input window, operand 1']
    #allocation6 [shape = 's32[2]{0}', space=sflag, size = 0x8, scoped, tag = 'scoped memory for tpu_custom_call.1']
    #allocation7 [shape = 'u8[8192]{0}', space=vmem, size = 0x2000, scoped, tag = 'input window, operand 2']
    #allocation8 [shape = 'u8[16384]{0}', space=vmem, size = 0x4000, scoped, tag = 'input window, operand 3, single buffered']
    #allocation9 [shape = 's32[1]{0}', space=sflag, size = 0x4, scoped, tag = 'scoped memory for tpu_custom_call.1']
    #allocation10 [shape = 'u8[16384]{0}', space=vmem, size = 0x4000, scoped, tag = 'input window, operand 5, single buffered']
    #allocation11 [shape = 'u8[16384]{0}', space=vmem, size = 0x4000, scoped, tag = 'input window, operand 7, single buffered']
    #allocation12 [shape = 's32[1]{0}', space=sflag, size = 0x4, scoped, tag = 'scoped memory for tpu_custom_call.1']
    #allocation13 [shape = 'u8[512]{0}', space=vmem, size = 0x400, scoped, tag = 'input window, operand 8, single buffered']
    #allocation14 [shape = 'u8[8192]{0}', space=vmem, size = 0x2000, scoped, tag = 'output window, operand 0']
    %16 = vsyncpa [#allocation3], 0
    %s17 = scalar_lea.sflag [#allocation3], 1
    %18 = vsyncpa %s17, 0
    %19 = vsyncpa [#allocation6], 0
    %s20 = scalar_lea.sflag [#allocation6], 1
    %21 = vsyncpa %s20, 0
    %22 = vsyncpa [#allocation9], 0
    %23 = vsyncpa [#allocation12], 0
    %24 = vsyncpa [#allocation4], 0
    %s25 = scalar_lea.sflag [#allocation4], 1
    %26 = vsyncpa %s25, 0
    loop: start=0, step=1, limit=4
    $region2: #{tpu_custom_call.1} parent=1 // loop_pre_header
      _
    $region3: #{tpu_custom_call.1} parent=1 // loop_header
      %s28 = sphi 0, %s32
      %p29 = scmp.ge.s32.totalorder %s28, 4
      %s38 = sphi 0, %s40
      %s41 = sphi 0, %s38
      %s42 = sphi 0, %s41
      %s58 = sphi 0, %s42
      %s64 = sphi 0, %s66
      %s67 = sphi 0, %s64
      %s68 = sphi 0, %s67
      %s84 = sphi 0, %s68
      %s90 = sphi 0, %s92
      %s93 = sphi 0, %s90
      %s94 = sphi 0, %s93
      %s110 = sphi 0, %s94
      %s114 = sphi 0, %s114
      %s116 = sphi 0, %s114
      %s117 = sphi 0, %s116
      %s131 = sphi 0, %s117
      %s135 = sphi 0, %s135
      %s137 = sphi 0, %s135
      %s138 = sphi 0, %s137
      %s152 = sphi 0, %s138
      %s156 = sphi 0, %s156
      %s158 = sphi 0, %s156
      %s159 = sphi 0, %s158
      %s173 = sphi 0, %s159
      %s177 = sphi 0, %s177
      %s179 = sphi 0, %s177
      %s180 = sphi 0, %s179
      %s194 = sphi 0, %s180
      %s198 = sphi 0, %s198
      %s200 = sphi 0, %s198
      %s201 = sphi 0, %s200
      %s215 = sphi 0, %s201
      %s219 = sphi 0, %s219
      %s221 = sphi 0, %s219
      %s222 = sphi 0, %s221
      %s236 = sphi 0, %s222
      %s240 = sphi 0, %s240
      %s242 = sphi 0, %s240
      %s243 = sphi 0, %s242
      %s257 = sphi 0, %s243
      %s261 = sphi 0, %s261
      %s263 = sphi 0, %s261
      %s264 = sphi 0, %s263
      %s278 = sphi 0, %s264
      %s284 = sphi 0, %s286
      %s287 = sphi 0, %s284
      %s288 = sphi 0, %s287
      %s304 = sphi 0, %s288
    $region4: #{tpu_custom_call.1} parent=1 // loop_header_branch
      %31 = sbr.rel (%p29) target = $region8
    $region5: #{tpu_custom_call.1} parent=1 // loop_body
      %s33 = ssub.s32 %s28, 1
      %s34 = ssub.s32 %s28, 2
      %s35 = sadd.s32 %s28, 1
      %s36 = ssub.s32 %s28, %s35
      %p37 = scmp.eq.s32.totalorder %s36, 0
      %s39 = sadd.s32 %s38, 1
      %s40 = scalar_select %p37, %s38, %s39
      %p43 = pneg %p37
      %p44 = scmp.eq.s32.totalorder %s28, 1
      %p45 = por %p43, %p44
      %p46 = scmp.ne.s32.totalorder %s38, %s41
      %p47 = scmp.eq.s32.totalorder %s28, 0
      %p48 = por %p46, %p47
      %p49 = scmp.ne.s32.totalorder %s38, %s41
      %p50 = scmp.eq.s32.totalorder %s33, 1
      %p51 = por %p49, %p50
      %p52 = scmp.ne.s32.totalorder %s41, %s42
      %p53 = scmp.eq.s32.totalorder %s33, 0
      %p54 = por %p52, %p53
      %p55 = scmp.ne.s32.totalorder %s41, %s42
      %p56 = scmp.eq.s32.totalorder %s34, 1
      %p57 = por %p55, %p56
      %p59 = scmp.ne.s32.totalorder %s42, %s58
      %p60 = scmp.eq.s32.totalorder %s34, 0
      %p61 = por %p59, %p60
      %s62 = ssub.s32 %s28, %s35
      %p63 = scmp.eq.s32.totalorder %s62, 0
      %s65 = sadd.s32 %s64, 1
      %s66 = scalar_select %p63, %s64, %s65
      %p69 = pneg %p63
      %p70 = scmp.eq.s32.totalorder %s28, 1
      %p71 = por %p69, %p70
      %p72 = scmp.ne.s32.totalorder %s64, %s67
      %p73 = scmp.eq.s32.totalorder %s28, 0
      %p74 = por %p72, %p73
      %p75 = scmp.ne.s32.totalorder %s64, %s67
      %p76 = scmp.eq.s32.totalorder %s33, 1
      %p77 = por %p75, %p76
      %p78 = scmp.ne.s32.totalorder %s67, %s68
      %p79 = scmp.eq.s32.totalorder %s33, 0
      %p80 = por %p78, %p79
      %p81 = scmp.ne.s32.totalorder %s67, %s68
      %p82 = scmp.eq.s32.totalorder %s34, 1
      %p83 = por %p81, %p82
      %p85 = scmp.ne.s32.totalorder %s68, %s84
      %p86 = scmp.eq.s32.totalorder %s34, 0
      %p87 = por %p85, %p86
      %s88 = ssub.s32 %s28, %s35
      %p89 = scmp.eq.s32.totalorder %s88, 0
      %s91 = sadd.s32 %s90, 1
      %s92 = scalar_select %p89, %s90, %s91
      %p95 = pneg %p89
      %p96 = scmp.eq.s32.totalorder %s28, 1
      %p97 = por %p95, %p96
      %p98 = scmp.ne.s32.totalorder %s90, %s93
      %p99 = scmp.eq.s32.totalorder %s28, 0
      %p100 = por %p98, %p99
      %p101 = scmp.ne.s32.totalorder %s90, %s93
      %p102 = scmp.eq.s32.totalorder %s33, 1
      %p103 = por %p101, %p102
      %p104 = scmp.ne.s32.totalorder %s93, %s94
      %p105 = scmp.eq.s32.totalorder %s33, 0
      %p106 = por %p104, %p105
      %p107 = scmp.ne.s32.totalorder %s93, %s94
      %p108 = scmp.eq.s32.totalorder %s34, 1
      %p109 = por %p107, %p108
      %p111 = scmp.ne.s32.totalorder %s94, %s110
      %p112 = scmp.eq.s32.totalorder %s34, 0
      %p113 = por %p111, %p112
      %s115 = sadd.s32 %s114, 1
      %p118 = scmp.eq.s32.totalorder %s28, 1
      %p119 = scmp.ne.s32.totalorder %s114, %s116
      %p120 = scmp.eq.s32.totalorder %s28, 0
      %p121 = por %p119, %p120
      %p122 = scmp.ne.s32.totalorder %s114, %s116
      %p123 = scmp.eq.s32.totalorder %s33, 1
      %p124 = por %p122, %p123
      %p125 = scmp.ne.s32.totalorder %s116, %s117
      %p126 = scmp.eq.s32.totalorder %s33, 0
      %p127 = por %p125, %p126
      %p128 = scmp.ne.s32.totalorder %s116, %s117
      %p129 = scmp.eq.s32.totalorder %s34, 1
      %p130 = por %p128, %p129
      %p132 = scmp.ne.s32.totalorder %s117, %s131
      %p133 = scmp.eq.s32.totalorder %s34, 0
      %p134 = por %p132, %p133
      %s136 = sadd.s32 %s135, 1
      %p139 = scmp.eq.s32.totalorder %s28, 1
      %p140 = scmp.ne.s32.totalorder %s135, %s137
      %p141 = scmp.eq.s32.totalorder %s28, 0
      %p142 = por %p140, %p141
      %p143 = scmp.ne.s32.totalorder %s135, %s137
      %p144 = scmp.eq.s32.totalorder %s33, 1
      %p145 = por %p143, %p144
      %p146 = scmp.ne.s32.totalorder %s137, %s138
      %p147 = scmp.eq.s32.totalorder %s33, 0
      %p148 = por %p146, %p147
      %p149 = scmp.ne.s32.totalorder %s137, %s138
      %p150 = scmp.eq.s32.totalorder %s34, 1
      %p151 = por %p149, %p150
      %p153 = scmp.ne.s32.totalorder %s138, %s152
      %p154 = scmp.eq.s32.totalorder %s34, 0
      %p155 = por %p153, %p154
      %s157 = sadd.s32 %s156, 1
      %p160 = scmp.eq.s32.totalorder %s28, 1
      %p161 = scmp.ne.s32.totalorder %s156, %s158
      %p162 = scmp.eq.s32.totalorder %s28, 0
      %p163 = por %p161, %p162
      %p164 = scmp.ne.s32.totalorder %s156, %s158
      %p165 = scmp.eq.s32.totalorder %s33, 1
      %p166 = por %p164, %p165
      %p167 = scmp.ne.s32.totalorder %s158, %s159
      %p168 = scmp.eq.s32.totalorder %s33, 0
      %p169 = por %p167, %p168
      %p170 = scmp.ne.s32.totalorder %s158, %s159
      %p171 = scmp.eq.s32.totalorder %s34, 1
      %p172 = por %p170, %p171
      %p174 = scmp.ne.s32.totalorder %s159, %s173
      %p175 = scmp.eq.s32.totalorder %s34, 0
      %p176 = por %p174, %p175
      %s178 = sadd.s32 %s177, 1
      %p181 = scmp.eq.s32.totalorder %s28, 1
      %p182 = scmp.ne.s32.totalorder %s177, %s179
      %p183 = scmp.eq.s32.totalorder %s28, 0
      %p184 = por %p182, %p183
      %p185 = scmp.ne.s32.totalorder %s177, %s179
      %p186 = scmp.eq.s32.totalorder %s33, 1
      %p187 = por %p185, %p186
      %p188 = scmp.ne.s32.totalorder %s179, %s180
      %p189 = scmp.eq.s32.totalorder %s33, 0
      %p190 = por %p188, %p189
      %p191 = scmp.ne.s32.totalorder %s179, %s180
      %p192 = scmp.eq.s32.totalorder %s34, 1
      %p193 = por %p191, %p192
      %p195 = scmp.ne.s32.totalorder %s180, %s194
      %p196 = scmp.eq.s32.totalorder %s34, 0
      %p197 = por %p195, %p196
      %s199 = sadd.s32 %s198, 1
      %p202 = scmp.eq.s32.totalorder %s28, 1
      %p203 = scmp.ne.s32.totalorder %s198, %s200
      %p204 = scmp.eq.s32.totalorder %s28, 0
      %p205 = por %p203, %p204
      %p206 = scmp.ne.s32.totalorder %s198, %s200
      %p207 = scmp.eq.s32.totalorder %s33, 1
      %p208 = por %p206, %p207
      %p209 = scmp.ne.s32.totalorder %s200, %s201
      %p210 = scmp.eq.s32.totalorder %s33, 0
      %p211 = por %p209, %p210
      %p212 = scmp.ne.s32.totalorder %s200, %s201
      %p213 = scmp.eq.s32.totalorder %s34, 1
      %p214 = por %p212, %p213
      %p216 = scmp.ne.s32.totalorder %s201, %s215
      %p217 = scmp.eq.s32.totalorder %s34, 0
      %p218 = por %p216, %p217
      %s220 = sadd.s32 %s219, 1
      %p223 = scmp.eq.s32.totalorder %s28, 1
      %p224 = scmp.ne.s32.totalorder %s219, %s221
      %p225 = scmp.eq.s32.totalorder %s28, 0
      %p226 = por %p224, %p225
      %p227 = scmp.ne.s32.totalorder %s219, %s221
      %p228 = scmp.eq.s32.totalorder %s33, 1
      %p229 = por %p227, %p228
      %p230 = scmp.ne.s32.totalorder %s221, %s222
      %p231 = scmp.eq.s32.totalorder %s33, 0
      %p232 = por %p230, %p231
      %p233 = scmp.ne.s32.totalorder %s221, %s222
      %p234 = scmp.eq.s32.totalorder %s34, 1
      %p235 = por %p233, %p234
      %p237 = scmp.ne.s32.totalorder %s222, %s236
      %p238 = scmp.eq.s32.totalorder %s34, 0
      %p239 = por %p237, %p238
      %s241 = sadd.s32 %s240, 1
      %p244 = scmp.eq.s32.totalorder %s28, 1
      %p245 = scmp.ne.s32.totalorder %s240, %s242
      %p246 = scmp.eq.s32.totalorder %s28, 0
      %p247 = por %p245, %p246
      %p248 = scmp.ne.s32.totalorder %s240, %s242
      %p249 = scmp.eq.s32.totalorder %s33, 1
      %p250 = por %p248, %p249
      %p251 = scmp.ne.s32.totalorder %s242, %s243
      %p252 = scmp.eq.s32.totalorder %s33, 0
      %p253 = por %p251, %p252
      %p254 = scmp.ne.s32.totalorder %s242, %s243
      %p255 = scmp.eq.s32.totalorder %s34, 1
      %p256 = por %p254, %p255
      %p258 = scmp.ne.s32.totalorder %s243, %s257
      %p259 = scmp.eq.s32.totalorder %s34, 0
      %p260 = por %p258, %p259
      %s262 = sadd.s32 %s261, 1
      %p265 = scmp.eq.s32.totalorder %s28, 1
      %p266 = scmp.ne.s32.totalorder %s261, %s263
      %p267 = scmp.eq.s32.totalorder %s28, 0
      %p268 = por %p266, %p267
      %p269 = scmp.ne.s32.totalorder %s261, %s263
      %p270 = scmp.eq.s32.totalorder %s33, 1
      %p271 = por %p269, %p270
      %p272 = scmp.ne.s32.totalorder %s263, %s264
      %p273 = scmp.eq.s32.totalorder %s33, 0
      %p274 = por %p272, %p273
      %p275 = scmp.ne.s32.totalorder %s263, %s264
      %p276 = scmp.eq.s32.totalorder %s34, 1
      %p277 = por %p275, %p276
      %p279 = scmp.ne.s32.totalorder %s264, %s278
      %p280 = scmp.eq.s32.totalorder %s34, 0
      %p281 = por %p279, %p280
      %s282 = ssub.s32 %s28, %s35
      %p283 = scmp.eq.s32.totalorder %s282, 0
      %s285 = sadd.s32 %s284, 1
      %s286 = scalar_select %p283, %s284, %s285
      %p289 = pneg %p283
      %p290 = scmp.eq.s32.totalorder %s28, 1
      %p291 = por %p289, %p290
      %p292 = scmp.ne.s32.totalorder %s284, %s287
      %p293 = scmp.eq.s32.totalorder %s28, 0
      %p294 = por %p292, %p293
      %p295 = scmp.ne.s32.totalorder %s284, %s287
      %p296 = scmp.eq.s32.totalorder %s33, 1
      %p297 = por %p295, %p296
      %p298 = scmp.ne.s32.totalorder %s287, %s288
      %p299 = scmp.eq.s32.totalorder %s33, 0
      %p300 = por %p298, %p299
      %p301 = scmp.ne.s32.totalorder %s287, %s288
      %p302 = scmp.eq.s32.totalorder %s34, 1
      %p303 = por %p301, %p302
      %p305 = scmp.ne.s32.totalorder %s288, %s304
      %p306 = scmp.eq.s32.totalorder %s34, 0
      %p307 = por %p305, %p306
      %p308 = scmp.le.s32.totalorder 1, %s28
      %p309 = scmp.lt.s32.totalorder %s28, 3
      %p310 = pnand %p308, %p309
      %p311 = pneg %p310
      // Predicated region
      $region9: #{tpu_custom_call.1} parent=5 // pred_check
        _
      $region10: #{tpu_custom_call.1} parent=5 // pred_check_branch
        %313 = sbr.rel (%p310) target = $region12
      $region11: #{tpu_custom_call.1} parent=5 // pred_region
        %s314 = ssub.s32 %s28, 1
        // Predicated region
        $region13: #{tpu_custom_call.1} parent=11 // pred_check
          %p315 = pneg %p127
        $region14: #{tpu_custom_call.1} parent=11 // pred_check_branch
          %317 = sbr.rel (%p315) target = $region16
        $region15: #{tpu_custom_call.1} parent=11 // pred_region
          %s319 = ssub.s32 512, 512
          %320 = vsyncadd [#allocation9], %s319
          %s321 = sshll.u32 [#allocation8], 4
          %s322 = int_to_ptr.vmem [resolvable:$true] %s321
          %327 = dma.hbm_to_vmem [thread:$0]  %s3, 512, %s322, [#allocation9], 128, 128, 8
        $region16: #{tpu_custom_call.1} parent=11 // pred_fallthru
          _
        // Predicated region
        $region17: #{tpu_custom_call.1} parent=11 // pred_check
          %p328 = pneg %p148
        $region18: #{tpu_custom_call.1} parent=11 // pred_check_branch
          %330 = sbr.rel (%p328) target = $region20
        $region19: #{tpu_custom_call.1} parent=11 // pred_region
          _
        $region20: #{tpu_custom_call.1} parent=11 // pred_fallthru
          _
        // Predicated region
        $region21: #{tpu_custom_call.1} parent=11 // pred_check
          %p331 = pneg %p169
        $region22: #{tpu_custom_call.1} parent=11 // pred_check_branch
          %333 = sbr.rel (%p331) target = $region24
        $region23: #{tpu_custom_call.1} parent=11 // pred_region
          %s335 = ssub.s32 512, 512
          %336 = vsyncadd [#allocation9], %s335
          %s337 = sshll.u32 [#allocation10], 4
          %s338 = int_to_ptr.vmem [resolvable:$true] %s337
          %343 = dma.hbm_to_vmem [thread:$0]  %s5, 512, %s338, [#allocation9], 128, 128, 8
        $region24: #{tpu_custom_call.1} parent=11 // pred_fallthru
          _
        // Predicated region
        $region25: #{tpu_custom_call.1} parent=11 // pred_check
          %p344 = pneg %p190
        $region26: #{tpu_custom_call.1} parent=11 // pred_check_branch
          %346 = sbr.rel (%p344) target = $region28
        $region27: #{tpu_custom_call.1} parent=11 // pred_region
          _
        $region28: #{tpu_custom_call.1} parent=11 // pred_fallthru
          _
        // Predicated region
        $region29: #{tpu_custom_call.1} parent=11 // pred_check
          %p347 = pneg %p211
        $region30: #{tpu_custom_call.1} parent=11 // pred_check_branch
          %349 = sbr.rel (%p347) target = $region32
        $region31: #{tpu_custom_call.1} parent=11 // pred_region
          %s351 = ssub.s32 512, 512
          %352 = vsyncadd [#allocation12], %s351
          %s353 = sshll.u32 [#allocation11], 4
          %s354 = int_to_ptr.vmem [resolvable:$true] %s353
          %359 = dma.hbm_to_vmem [thread:$0]  %s7, 512, %s354, [#allocation12], 128, 128, 8
        $region32: #{tpu_custom_call.1} parent=11 // pred_fallthru
          _
        // Predicated region
        $region33: #{tpu_custom_call.1} parent=11 // pred_check
          %p360 = pneg %p232
        $region34: #{tpu_custom_call.1} parent=11 // pred_check_branch
          %362 = sbr.rel (%p360) target = $region36
        $region35: #{tpu_custom_call.1} parent=11 // pred_region
          %s364 = ssub.s32 16, 16
          %365 = vsyncadd [#allocation12], %s364
          %s367 = sshll.u32 [#allocation13], 4
          %s368 = int_to_ptr.vmem [resolvable:$true] %s367
          %370 = dma.hbm_to_vmem [thread:$0]  %s8, 16, %s368, [#allocation12]
        $region36: #{tpu_custom_call.1} parent=11 // pred_fallthru
          _
        // Predicated region
        $region37: #{tpu_custom_call.1} parent=11 // pred_check
          %p371 = pneg %p253
        $region38: #{tpu_custom_call.1} parent=11 // pred_check_branch
          %373 = sbr.rel (%p371) target = $region40
        $region39: #{tpu_custom_call.1} parent=11 // pred_region
          _
        $region40: #{tpu_custom_call.1} parent=11 // pred_fallthru
          _
        // Predicated region
        $region41: #{tpu_custom_call.1} parent=11 // pred_check
          %p374 = pneg %p274
        $region42: #{tpu_custom_call.1} parent=11 // pred_check_branch
          %376 = sbr.rel (%p374) target = $region44
        $region43: #{tpu_custom_call.1} parent=11 // pred_region
          _
        $region44: #{tpu_custom_call.1} parent=11 // pred_fallthru
          _
      $region12: #{tpu_custom_call.1} parent=5 // pred_fallthru
        _
      %p377 = scmp.lt.s32.totalorder %s28, 2
      // Predicated region
      $region45: #{tpu_custom_call.1} parent=5 // pred_check
        %p378 = pneg %p377
      $region46: #{tpu_custom_call.1} parent=5 // pred_check_branch
        %380 = sbr.rel (%p378) target = $region48
      $region47: #{tpu_custom_call.1} parent=5 // pred_region
        // Predicated region
        $region49: #{tpu_custom_call.1} parent=47 // pred_check
          %p381 = pneg %p48
        $region50: #{tpu_custom_call.1} parent=47 // pred_check_branch
          %383 = sbr.rel (%p381) target = $region52
        $region51: #{tpu_custom_call.1} parent=47 // pred_region
          %s384 = sand.u32 %s38, 1
          %s385 = scalar_lea.sflag [#allocation3], %s384
          %s386 = sand.u32 %s38, 1
          %s387 = smul.addr %s386, 8
          %s388 = scalar_lea.vmem [#allocation2], %s387
          %s390 = ssub.s32 128, 128
          %391 = vsyncadd %s385, %s390
          %s392 = smul.addr %s28, 128
          %s393 = scalar_lea.hbm %s0, %s392
          %s395 = sshll.u32 %s388, 4
          %s396 = int_to_ptr.vmem [resolvable:$true] %s395
          %398 = dma.hbm_to_vmem [thread:$0]  %s393, 128, %s396, %s385
        $region52: #{tpu_custom_call.1} parent=47 // pred_fallthru
          _
        // Predicated region
        $region53: #{tpu_custom_call.1} parent=47 // pred_check
          %p399 = pneg %p74
        $region54: #{tpu_custom_call.1} parent=47 // pred_check_branch
          %401 = sbr.rel (%p399) target = $region56
        $region55: #{tpu_custom_call.1} parent=47 // pred_region
          %s402 = sand.u32 %s28, 1
          %s403 = scalar_lea.sflag [#allocation6], %s402
          %s404 = sand.u32 %s64, 1
          %s405 = smul.addr %s404, 8
          %s406 = scalar_lea.vmem [#allocation5], %s405
          %s408 = ssub.s32 128, 128
          %409 = vsyncadd %s403, %s408
          %s410 = smul.addr %s28, 128
          %s411 = scalar_lea.hbm %s1, %s410
          %s413 = sshll.u32 %s406, 4
          %s414 = int_to_ptr.vmem [resolvable:$true] %s413
          %416 = dma.hbm_to_vmem [thread:$0]  %s411, 128, %s414, %s403
        $region56: #{tpu_custom_call.1} parent=47 // pred_fallthru
          _
        // Predicated region
        $region57: #{tpu_custom_call.1} parent=47 // pred_check
          %p417 = pneg %p100
        $region58: #{tpu_custom_call.1} parent=47 // pred_check_branch
          %419 = sbr.rel (%p417) target = $region60
        $region59: #{tpu_custom_call.1} parent=47 // pred_region
          %s420 = sand.u32 %s28, 1
          %s421 = scalar_lea.sflag [#allocation6], %s420
          %s422 = sand.u32 %s90, 1
          %s423 = smul.addr %s422, 8
          %s424 = scalar_lea.vmem [#allocation7], %s423
          %s426 = ssub.s32 128, 128
          %427 = vsyncadd %s421, %s426
          %s428 = smul.addr %s28, 128
          %s429 = scalar_lea.hbm %s2, %s428
          %s431 = sshll.u32 %s424, 4
          %s432 = int_to_ptr.vmem [resolvable:$true] %s431
          %434 = dma.hbm_to_vmem [thread:$0]  %s429, 128, %s432, %s421
        $region60: #{tpu_custom_call.1} parent=47 // pred_fallthru
          _
      $region48: #{tpu_custom_call.1} parent=5 // pred_fallthru
        _
      %p435 = scmp.le.s32.totalorder 1, %s28
      %p436 = scmp.lt.s32.totalorder %s28, 3
      %p437 = pnand %p435, %p436
      %p438 = pneg %p437
      // Predicated region
      $region61: #{tpu_custom_call.1} parent=5 // pred_check
        _
      $region62: #{tpu_custom_call.1} parent=5 // pred_check_branch
        %440 = sbr.rel (%p437) target = $region64
      $region63: #{tpu_custom_call.1} parent=5 // pred_region
        %s441 = ssub.s32 %s28, 1
        %s442 = sand.u32 %s41, 1
        %s443 = scalar_lea.sflag [#allocation3], %s442
        %s444 = sand.u32 %s41, 1
        %s445 = smul.addr %s444, 8
        %s446 = scalar_lea.vmem [#allocation2], %s445
        // Predicated region
        $region65: #{tpu_custom_call.1} parent=63 // pred_check
          %p447 = pneg %p54
        $region66: #{tpu_custom_call.1} parent=63 // pred_check_branch
          %449 = sbr.rel (%p447) target = $region68
        $region67: #{tpu_custom_call.1} parent=63 // pred_region
          %450 = dma.done %s443, 128
        $region68: #{tpu_custom_call.1} parent=63 // pred_fallthru
          _
        %s451 = sand.u32 %s33, 1
        %s452 = scalar_lea.sflag [#allocation6], %s451
        %s453 = sand.u32 %s67, 1
        %s454 = smul.addr %s453, 8
        %s455 = scalar_lea.vmem [#allocation5], %s454
        // Predicated region
        $region69: #{tpu_custom_call.1} parent=63 // pred_check
          %p456 = pneg %p80
        $region70: #{tpu_custom_call.1} parent=63 // pred_check_branch
          %458 = sbr.rel (%p456) target = $region72
        $region71: #{tpu_custom_call.1} parent=63 // pred_region
          %459 = dma.done %s452, 128
        $region72: #{tpu_custom_call.1} parent=63 // pred_fallthru
          _
        %s460 = sand.u32 %s33, 1
        %s461 = scalar_lea.sflag [#allocation6], %s460
        %s462 = sand.u32 %s93, 1
        %s463 = smul.addr %s462, 8
        %s464 = scalar_lea.vmem [#allocation7], %s463
        // Predicated region
        $region73: #{tpu_custom_call.1} parent=63 // pred_check
          %p465 = pneg %p106
        $region74: #{tpu_custom_call.1} parent=63 // pred_check_branch
          %467 = sbr.rel (%p465) target = $region76
        $region75: #{tpu_custom_call.1} parent=63 // pred_region
          %468 = dma.done %s461, 128
        $region76: #{tpu_custom_call.1} parent=63 // pred_fallthru
          _
        // Predicated region
        $region77: #{tpu_custom_call.1} parent=63 // pred_check
          %p469 = pneg %p127
        $region78: #{tpu_custom_call.1} parent=63 // pred_check_branch
          %471 = sbr.rel (%p469) target = $region80
        $region79: #{tpu_custom_call.1} parent=63 // pred_region
          %472 = dma.done [#allocation9], 512
        $region80: #{tpu_custom_call.1} parent=63 // pred_fallthru
          _
        // Predicated region
        $region81: #{tpu_custom_call.1} parent=63 // pred_check
          %p473 = pneg %p169
        $region82: #{tpu_custom_call.1} parent=63 // pred_check_branch
          %475 = sbr.rel (%p473) target = $region84
        $region83: #{tpu_custom_call.1} parent=63 // pred_region
          %476 = dma.done [#allocation9], 512
        $region84: #{tpu_custom_call.1} parent=63 // pred_fallthru
          _
        // Predicated region
        $region85: #{tpu_custom_call.1} parent=63 // pred_check
          %p477 = pneg %p211
        $region86: #{tpu_custom_call.1} parent=63 // pred_check_branch
          %479 = sbr.rel (%p477) target = $region88
        $region87: #{tpu_custom_call.1} parent=63 // pred_region
          %480 = dma.done [#allocation12], 512
        $region88: #{tpu_custom_call.1} parent=63 // pred_fallthru
          _
        // Predicated region
        $region89: #{tpu_custom_call.1} parent=63 // pred_check
          %p481 = pneg %p232
        $region90: #{tpu_custom_call.1} parent=63 // pred_check_branch
          %483 = sbr.rel (%p481) target = $region92
        $region91: #{tpu_custom_call.1} parent=63 // pred_region
          %484 = dma.done [#allocation12], 16
        $region92: #{tpu_custom_call.1} parent=63 // pred_fallthru
          _
        %s485 = sand.u32 %s41, 1
        %s486 = scalar_lea.sflag [#allocation3], %s485
        %s487 = sand.u32 %s41, 1
        %s488 = smul.addr %s487, 8
        %s489 = scalar_lea.vmem [#allocation2], %s488
        %p490 = pneg %p54
        %p491 = pneg %p51
        %s492 = sand.u32 %s33, 1
        %s493 = scalar_lea.sflag [#allocation6], %s492
        %s494 = sand.u32 %s67, 1
        %s495 = smul.addr %s494, 8
        %s496 = scalar_lea.vmem [#allocation5], %s495
        %p497 = pneg %p80
        %p498 = pneg %p77
        %s499 = sand.u32 %s33, 1
        %s500 = scalar_lea.sflag [#allocation6], %s499
        %s501 = sand.u32 %s93, 1
        %s502 = smul.addr %s501, 8
        %s503 = scalar_lea.vmem [#allocation7], %s502
        %p504 = pneg %p106
        %p505 = pneg %p103
        %p506 = pneg %p127
        %p507 = pneg %p124
        %p508 = pneg %p148
        %p509 = pneg %p145
        %p510 = pneg %p169
        %p511 = pneg %p166
        %p512 = pneg %p190
        %p513 = pneg %p187
        %p514 = pneg %p211
        %p515 = pneg %p208
        %p516 = pneg %p232
        %p517 = pneg %p229
        %p518 = pneg %p253
        %p519 = pneg %p250
        %p520 = pneg %p274
        %p521 = pneg %p271
        %p522 = pneg %p300
        %p523 = pneg %p297
        %s524 = sand.u32 %s287, 1
        %s525 = scalar_lea.sflag [#allocation4], %s524
        %s526 = sand.u32 %s287, 1
        %s527 = smul.addr %s526, 8
        %s528 = scalar_lea.vmem [#allocation14], %s527
        %v529 = vld [vmem:[%s446] sm:$0xff]
        %v530 = vld [vmem:[#allocation8] sm:$0xff]
        %v531 = vld [vmem:[#allocation8 + $0x8] sm:$0xff]
        %v532 = vld [vmem:[#allocation8 + $0x10] sm:$0xff]
        %v533 = vld [vmem:[#allocation8 + $0x18] sm:$0xff]
        %v534 = vld [vmem:[%s4] sm:$0x1]
        %v536 = vlaneseq
        %v537 = vshrl.u32 %v536, 7
        %v538 = vsub.s32 0, %v537
        %v539 = vrot.slane %v534, %v538
        %vm541 = vcmask 261120
        %v543 = vsel %vm541, %v529, 0
        %v546 = vsel %vm541, %v530, 0
        %v549 = vsel %vm541, %v531, 0
        %v552 = vsel %vm541, %v532, 0
        %v555 = vsel %vm541, %v533, 0
        %557 = vmatprep.subr.mxu0 0.0
        %558 = vmatpush1.xpose.msra.mxu0 %v546
        %559 = vmatprep.subr.mxu0 0.0
        %560 = vmatpush1.xpose.msra.mxu0 %v549
        %561 = vmatprep.subr.mxu0 0.0
        %562 = vmatpush1.xpose.msra.mxu0 %v552
        %563 = vmatprep.subr.mxu0 0.0
        %564 = vmatpush1.xpose.msra.mxu0 %v555
        %565 = vmatprep.subr.mxu0 0.0
        %566 = vmatpush1.xpose.msra.mxu0 0.0
        %567 = vmatprep.subr.mxu0 0.0
        %568 = vmatpush1.xpose.msra.mxu0 0.0
        %569 = vmatprep.subr.mxu0 0.0
        %570 = vmatpush1.xpose.msra.mxu0 0.0
        %571 = vmatprep.subr.mxu0 0.0
        %572 = vmatpush1.xpose.msra.mxu0 0.0
        %573 = vmatprep.subr.mxu0 0.0
        %574 = vmatpush1.xpose.msra.mxu0 0.0
        %575 = vmatprep.subr.mxu0 0.0
        %576 = vmatpush1.xpose.msra.mxu0 0.0
        %577 = vmatprep.subr.mxu0 0.0
        %578 = vmatpush1.xpose.msra.mxu0 0.0
        %579 = vmatprep.subr.mxu0 0.0
        %580 = vmatpush1.xpose.msra.mxu0 0.0
        %581 = vmatprep.subr.mxu0 0.0
        %582 = vmatpush1.xpose.msra.mxu0 0.0
        %583 = vmatprep.subr.mxu0 0.0
        %584 = vmatpush1.xpose.msra.mxu0 0.0
        %585 = vmatprep.subr.mxu0 0.0
        %586 = vmatpush1.xpose.msra.mxu0 0.0
        %587 = vmatprep.subr.mxu0 0.0
        %588 = vmatpush1.xpose.msra.mxu0 0.0
        %589 = vmatprep.subr.mxu0 0.0
        %590 = vmatpush1.xpose.msra.mxu0 0.0
        %591 = vmatprep.subr.mxu0 0.0
        %592 = vmatpush1.xpose.msra.mxu0 0.0
        %593 = vmatprep.subr.mxu0 0.0
        %594 = vmatpush1.xpose.msra.mxu0 0.0
        %595 = vmatprep.subr.mxu0 0.0
        %596 = vmatpush1.xpose.msra.mxu0 0.0
        %597 = vmatprep.subr.mxu0 0.0
        %598 = vmatpush1.xpose.msra.mxu0 0.0
        %599 = vmatprep.subr.mxu0 0.0
        %600 = vmatpush1.xpose.msra.mxu0 0.0
        %601 = vmatprep.subr.mxu0 0.0
        %602 = vmatpush1.xpose.msra.mxu0 0.0
        %603 = vmatprep.subr.mxu0 0.0
        %604 = vmatpush1.xpose.msra.mxu0 0.0
        %605 = vmatprep.subr.mxu0 0.0
        %606 = vmatpush1.xpose.msra.mxu0 0.0
        %607 = vmatprep.subr.mxu0 0.0
        %608 = vmatpush1.xpose.msra.mxu0 0.0
        %609 = vmatprep.subr.mxu0 0.0
        %610 = vmatpush1.xpose.msra.mxu0 0.0
        %611 = vmatprep.subr.mxu0 0.0
        %612 = vmatpush1.xpose.msra.mxu0 0.0
        %613 = vmatprep.subr.mxu0 0.0
        %614 = vmatpush1.xpose.msra.mxu0 0.0
        %615 = vmatprep.subr.mxu0 0.0
        %616 = vmatpush1.xpose.msra.mxu0 0.0
        %617 = vmatprep.subr.mxu0 0.0
        %618 = vmatpush1.xpose.msra.mxu0 0.0
        %619 = vmatprep.subr.mxu0 0.0
        %620 = vmatpush1.xpose.msra.mxu0 0.0
        %621 = vmatprep.mubr.f32.mxu0 0.0
        %622 = vmatmul.mubr.f32.gmra.mrb[0].mxu0 %v543
        %v623 = vpop.f32.mrb[0].mxu0
        %v624 = vadd.f32 %v539, %v623
        %v625 = vpop.f32.mrb[0].mxu0
        %626 = vdwg.mxu0
        %v627 = vmul.f32 %v624, 0.35355338
        %v628 = vld [vmem:[%s455] sm:$0xff]
        %v629 = vld [vmem:[#allocation10] sm:$0xff]
        %v630 = vld [vmem:[#allocation10 + $0x8] sm:$0xff]
        %v631 = vld [vmem:[#allocation10 + $0x10] sm:$0xff]
        %v632 = vld [vmem:[#allocation10 + $0x18] sm:$0xff]
        %v633 = vld [vmem:[%s6] sm:$0x1]
        %v635 = vlaneseq
        %v636 = vshrl.u32 %v635, 7
        %v637 = vsub.s32 0, %v636
        %v638 = vrot.slane %v633, %v637
        %v641 = vsel %vm541, %v628, 0
        %v644 = vsel %vm541, %v629, 0
        %v647 = vsel %vm541, %v630, 0
        %v650 = vsel %vm541, %v631, 0
        %v653 = vsel %vm541, %v632, 0
        %655 = vmatprep.subr.mxu0 0.0
        %656 = vmatpush1.xpose.msra.mxu0 %v644
        %657 = vmatprep.subr.mxu0 0.0
        %658 = vmatpush1.xpose.msra.mxu0 %v647
        %659 = vmatprep.subr.mxu0 0.0
        %660 = vmatpush1.xpose.msra.mxu0 %v650
        %661 = vmatprep.subr.mxu0 0.0
        %662 = vmatpush1.xpose.msra.mxu0 %v653
        %663 = vmatprep.subr.mxu0 0.0
        %664 = vmatpush1.xpose.msra.mxu0 0.0
        %665 = vmatprep.subr.mxu0 0.0
        %666 = vmatpush1.xpose.msra.mxu0 0.0
        %667 = vmatprep.subr.mxu0 0.0
        %668 = vmatpush1.xpose.msra.mxu0 0.0
        %669 = vmatprep.subr.mxu0 0.0
        %670 = vmatpush1.xpose.msra.mxu0 0.0
        %671 = vmatprep.subr.mxu0 0.0
        %672 = vmatpush1.xpose.msra.mxu0 0.0
        %673 = vmatprep.subr.mxu0 0.0
        %674 = vmatpush1.xpose.msra.mxu0 0.0
        %675 = vmatprep.subr.mxu0 0.0
        %676 = vmatpush1.xpose.msra.mxu0 0.0
        %677 = vmatprep.subr.mxu0 0.0
        %678 = vmatpush1.xpose.msra.mxu0 0.0
        %679 = vmatprep.subr.mxu0 0.0
        %680 = vmatpush1.xpose.msra.mxu0 0.0
        %681 = vmatprep.subr.mxu0 0.0
        %682 = vmatpush1.xpose.msra.mxu0 0.0
        %683 = vmatprep.subr.mxu0 0.0
        %684 = vmatpush1.xpose.msra.mxu0 0.0
        %685 = vmatprep.subr.mxu0 0.0
        %686 = vmatpush1.xpose.msra.mxu0 0.0
        %687 = vmatprep.subr.mxu0 0.0
        %688 = vmatpush1.xpose.msra.mxu0 0.0
        %689 = vmatprep.subr.mxu0 0.0
        %690 = vmatpush1.xpose.msra.mxu0 0.0
        %691 = vmatprep.subr.mxu0 0.0
        %692 = vmatpush1.xpose.msra.mxu0 0.0
        %693 = vmatprep.subr.mxu0 0.0
        %694 = vmatpush1.xpose.msra.mxu0 0.0
        %695 = vmatprep.subr.mxu0 0.0
        %696 = vmatpush1.xpose.msra.mxu0 0.0
        %697 = vmatprep.subr.mxu0 0.0
        %698 = vmatpush1.xpose.msra.mxu0 0.0
        %699 = vmatprep.subr.mxu0 0.0
        %700 = vmatpush1.xpose.msra.mxu0 0.0
        %701 = vmatprep.subr.mxu0 0.0
        %702 = vmatpush1.xpose.msra.mxu0 0.0
        %703 = vmatprep.subr.mxu0 0.0
        %704 = vmatpush1.xpose.msra.mxu0 0.0
        %705 = vmatprep.subr.mxu0 0.0
        %706 = vmatpush1.xpose.msra.mxu0 0.0
        %707 = vmatprep.subr.mxu0 0.0
        %708 = vmatpush1.xpose.msra.mxu0 0.0
        %709 = vmatprep.subr.mxu0 0.0
        %710 = vmatpush1.xpose.msra.mxu0 0.0
        %711 = vmatprep.subr.mxu0 0.0
        %712 = vmatpush1.xpose.msra.mxu0 0.0
        %713 = vmatprep.subr.mxu0 0.0
        %714 = vmatpush1.xpose.msra.mxu0 0.0
        %715 = vmatprep.subr.mxu0 0.0
        %716 = vmatpush1.xpose.msra.mxu0 0.0
        %717 = vmatprep.subr.mxu0 0.0
        %718 = vmatpush1.xpose.msra.mxu0 0.0
        %719 = vmatprep.mubr.f32.mxu0 0.0
        %720 = vmatmul.mubr.f32.gmra.mrb[0].mxu0 %v641
        %v721 = vpop.f32.mrb[0].mxu0
        %v722 = vadd.f32 %v638, %v721
        %v723 = vpop.f32.mrb[0].mxu0
        %724 = vdwg.mxu0
        %v725 = vld [vmem:[%s464] sm:$0xff]
        %v726 = vld [vmem:[#allocation11] sm:$0xff]
        %v727 = vld [vmem:[#allocation11 + $0x8] sm:$0xff]
        %v728 = vld [vmem:[#allocation11 + $0x10] sm:$0xff]
        %v729 = vld [vmem:[#allocation11 + $0x18] sm:$0xff]
        %v730 = vld [vmem:[#allocation13] sm:$0x1]
        %v732 = vlaneseq
        %v733 = vshrl.u32 %v732, 7
        %v734 = vsub.s32 0, %v733
        %v735 = vrot.slane %v730, %v734
        %v738 = vsel %vm541, %v725, 0
        %v741 = vsel %vm541, %v726, 0
        %v744 = vsel %vm541, %v727, 0
        %v747 = vsel %vm541, %v728, 0
        %v750 = vsel %vm541, %v729, 0
        %752 = vmatprep.subr.mxu0 0.0
        %753 = vmatpush1.xpose.msra.mxu0 %v741
        %754 = vmatprep.subr.mxu0 0.0
        %755 = vmatpush1.xpose.msra.mxu0 %v744
        %756 = vmatprep.subr.mxu0 0.0
        %757 = vmatpush1.xpose.msra.mxu0 %v747
        %758 = vmatprep.subr.mxu0 0.0
        %759 = vmatpush1.xpose.msra.mxu0 %v750
        %760 = vmatprep.subr.mxu0 0.0
        %761 = vmatpush1.xpose.msra.mxu0 0.0
        %762 = vmatprep.subr.mxu0 0.0
        %763 = vmatpush1.xpose.msra.mxu0 0.0
        %764 = vmatprep.subr.mxu0 0.0
        %765 = vmatpush1.xpose.msra.mxu0 0.0
        %766 = vmatprep.subr.mxu0 0.0
        %767 = vmatpush1.xpose.msra.mxu0 0.0
        %768 = vmatprep.subr.mxu0 0.0
        %769 = vmatpush1.xpose.msra.mxu0 0.0
        %770 = vmatprep.subr.mxu0 0.0
        %771 = vmatpush1.xpose.msra.mxu0 0.0
        %772 = vmatprep.subr.mxu0 0.0
        %773 = vmatpush1.xpose.msra.mxu0 0.0
        %774 = vmatprep.subr.mxu0 0.0
        %775 = vmatpush1.xpose.msra.mxu0 0.0
        %776 = vmatprep.subr.mxu0 0.0
        %777 = vmatpush1.xpose.msra.mxu0 0.0
        %778 = vmatprep.subr.mxu0 0.0
        %779 = vmatpush1.xpose.msra.mxu0 0.0
        %780 = vmatprep.subr.mxu0 0.0
        %781 = vmatpush1.xpose.msra.mxu0 0.0
        %782 = vmatprep.subr.mxu0 0.0
        %783 = vmatpush1.xpose.msra.mxu0 0.0
        %784 = vmatprep.subr.mxu0 0.0
        %785 = vmatpush1.xpose.msra.mxu0 0.0
        %786 = vmatprep.subr.mxu0 0.0
        %787 = vmatpush1.xpose.msra.mxu0 0.0
        %788 = vmatprep.subr.mxu0 0.0
        %789 = vmatpush1.xpose.msra.mxu0 0.0
        %790 = vmatprep.subr.mxu0 0.0
        %791 = vmatpush1.xpose.msra.mxu0 0.0
        %792 = vmatprep.subr.mxu0 0.0
        %793 = vmatpush1.xpose.msra.mxu0 0.0
        %794 = vmatprep.subr.mxu0 0.0
        %795 = vmatpush1.xpose.msra.mxu0 0.0
        %796 = vmatprep.subr.mxu0 0.0
        %797 = vmatpush1.xpose.msra.mxu0 0.0
        %798 = vmatprep.subr.mxu0 0.0
        %799 = vmatpush1.xpose.msra.mxu0 0.0
        %800 = vmatprep.subr.mxu0 0.0
        %801 = vmatpush1.xpose.msra.mxu0 0.0
        %802 = vmatprep.subr.mxu0 0.0
        %803 = vmatpush1.xpose.msra.mxu0 0.0
        %804 = vmatprep.subr.mxu0 0.0
        %805 = vmatpush1.xpose.msra.mxu0 0.0
        %806 = vmatprep.subr.mxu0 0.0
        %807 = vmatpush1.xpose.msra.mxu0 0.0
        %808 = vmatprep.subr.mxu0 0.0
        %809 = vmatpush1.xpose.msra.mxu0 0.0
        %810 = vmatprep.subr.mxu0 0.0
        %811 = vmatpush1.xpose.msra.mxu0 0.0
        %812 = vmatprep.subr.mxu0 0.0
        %813 = vmatpush1.xpose.msra.mxu0 0.0
        %814 = vmatprep.subr.mxu0 0.0
        %815 = vmatpush1.xpose.msra.mxu0 0.0
        %816 = vmatprep.mubr.f32.mxu0 0.0
        %817 = vmatmul.mubr.f32.gmra.mrb[0].mxu0 %v738
        %v818 = vpop.f32.mrb[0].mxu0
        %v819 = vadd.f32 %v735, %v818
        %v820 = vpop.f32.mrb[0].mxu0
        %821 = vdwg.mxu0
        %823 = vrot.lane.b32.xlu0 %v627, 120
        %v824 = vpop.permute.xlu0 %823
        %825 = vrot.lane.b32.xlu0 %v627, 112
        %v826 = vpop.permute.xlu0 %825
        %827 = vrot.lane.b32.xlu0 %v627, 104
        %v828 = vpop.permute.xlu0 %827
        %830 = vrot.lane.b32.xlu0 %v722, 120
        %v831 = vpop.permute.xlu0 %830
        %833 = vrot.lane.b32.xlu0 %v722, 112
        %v834 = vpop.permute.xlu0 %833
        %836 = vrot.lane.b32.xlu0 %v722, 104
        %v837 = vpop.permute.xlu0 %836
        %840 = vrot.lane.b32.xlu0 %v819, 120
        %v841 = vpop.permute.xlu0 %840
        %843 = vrot.lane.b32.xlu0 %v819, 112
        %v844 = vpop.permute.xlu0 %843
        %846 = vrot.lane.b32.xlu0 %v819, 104
        %v847 = vpop.permute.xlu0 %846
        %849 = vxpose.xlu0.b32.start [1/16] %v722, 128
        %850 = vxpose.xlu0.b32.cont [2/16] 0.0, 128
        %851 = vxpose.xlu0.b32.cont [3/16] 0.0, 128
        %852 = vxpose.xlu0.b32.cont [4/16] 0.0, 128
        %853 = vxpose.xlu0.b32.cont [5/16] 0.0, 128
        %854 = vxpose.xlu0.b32.cont [6/16] 0.0, 128
        %855 = vxpose.xlu0.b32.cont [7/16] 0.0, 128
        %856 = vxpose.xlu0.b32.cont [8/16] 0.0, 128
        %857 = vxpose.xlu0.b32.cont [9/16] 0.0, 128
        %858 = vxpose.xlu0.b32.cont [10/16] 0.0, 128
        %859 = vxpose.xlu0.b32.cont [11/16] 0.0, 128
        %860 = vxpose.xlu0.b32.cont [12/16] 0.0, 128
        %861 = vxpose.xlu0.b32.cont [13/16] 0.0, 128
        %862 = vxpose.xlu0.b32.cont [14/16] 0.0, 128
        %863 = vxpose.xlu0.b32.cont [15/16] 0.0, 128
        %864 = vxpose.xlu0.b32.end [16/16] 0.0, 128
        %v865 = vpop.trf.xlu0
        %v866 = vpop.trf.xlu0
        %v867 = vpop.trf.xlu0
        %v868 = vpop.trf.xlu0
        %v869 = vpop.trf.xlu0
        %v870 = vpop.trf.xlu0
        %v871 = vpop.trf.xlu0
        %v872 = vpop.trf.xlu0
        %v873 = vpop.trf.xlu0
        %v874 = vpop.trf.xlu0
        %v875 = vpop.trf.xlu0
        %v876 = vpop.trf.xlu0
        %v877 = vpop.trf.xlu0
        %v878 = vpop.trf.xlu0
        %v879 = vpop.trf.xlu0
        %v880 = vpop.trf.xlu0
        %881 = vxpose.xlu0.b32.start [1/16] %v831, 128
        %882 = vxpose.xlu0.b32.cont [2/16] 0.0, 128
        %883 = vxpose.xlu0.b32.cont [3/16] 0.0, 128
        %884 = vxpose.xlu0.b32.cont [4/16] 0.0, 128
        %885 = vxpose.xlu0.b32.cont [5/16] 0.0, 128
        %886 = vxpose.xlu0.b32.cont [6/16] 0.0, 128
        %887 = vxpose.xlu0.b32.cont [7/16] 0.0, 128
        %888 = vxpose.xlu0.b32.cont [8/16] 0.0, 128
        %889 = vxpose.xlu0.b32.cont [9/16] 0.0, 128
        %890 = vxpose.xlu0.b32.cont [10/16] 0.0, 128
        %891 = vxpose.xlu0.b32.cont [11/16] 0.0, 128
        %892 = vxpose.xlu0.b32.cont [12/16] 0.0, 128
        %893 = vxpose.xlu0.b32.cont [13/16] 0.0, 128
        %894 = vxpose.xlu0.b32.cont [14/16] 0.0, 128
        %895 = vxpose.xlu0.b32.cont [15/16] 0.0, 128
        %896 = vxpose.xlu0.b32.end [16/16] 0.0, 128
        %v897 = vpop.trf.xlu0
        %v898 = vpop.trf.xlu0
        %v899 = vpop.trf.xlu0
        %v900 = vpop.trf.xlu0
        %v901 = vpop.trf.xlu0
        %v902 = vpop.trf.xlu0
        %v903 = vpop.trf.xlu0
        %v904 = vpop.trf.xlu0
        %v905 = vpop.trf.xlu0
        %v906 = vpop.trf.xlu0
        %v907 = vpop.trf.xlu0
        %v908 = vpop.trf.xlu0
        %v909 = vpop.trf.xlu0
        %v910 = vpop.trf.xlu0
        %v911 = vpop.trf.xlu0
        %v912 = vpop.trf.xlu0
        %913 = vxpose.xlu0.b32.start [1/16] %v834, 128
        %914 = vxpose.xlu0.b32.cont [2/16] 0.0, 128
        %915 = vxpose.xlu0.b32.cont [3/16] 0.0, 128
        %916 = vxpose.xlu0.b32.cont [4/16] 0.0, 128
        %917 = vxpose.xlu0.b32.cont [5/16] 0.0, 128
        %918 = vxpose.xlu0.b32.cont [6/16] 0.0, 128
        %919 = vxpose.xlu0.b32.cont [7/16] 0.0, 128
        %920 = vxpose.xlu0.b32.cont [8/16] 0.0, 128
        %921 = vxpose.xlu0.b32.cont [9/16] 0.0, 128
        %922 = vxpose.xlu0.b32.cont [10/16] 0.0, 128
        %923 = vxpose.xlu0.b32.cont [11/16] 0.0, 128
        %924 = vxpose.xlu0.b32.cont [12/16] 0.0, 128
        %925 = vxpose.xlu0.b32.cont [13/16] 0.0, 128
        %926 = vxpose.xlu0.b32.cont [14/16] 0.0, 128
        %927 = vxpose.xlu0.b32.cont [15/16] 0.0, 128
        %928 = vxpose.xlu0.b32.end [16/16] 0.0, 128
        %v929 = vpop.trf.xlu0
        %v930 = vpop.trf.xlu0
        %v931 = vpop.trf.xlu0
        %v932 = vpop.trf.xlu0
        %v933 = vpop.trf.xlu0
        %v934 = vpop.trf.xlu0
        %v935 = vpop.trf.xlu0
        %v936 = vpop.trf.xlu0
        %v937 = vpop.trf.xlu0
        %v938 = vpop.trf.xlu0
        %v939 = vpop.trf.xlu0
        %v940 = vpop.trf.xlu0
        %v941 = vpop.trf.xlu0
        %v942 = vpop.trf.xlu0
        %v943 = vpop.trf.xlu0
        %v944 = vpop.trf.xlu0
        %945 = vxpose.xlu0.b32.start [1/16] %v837, 128
        %946 = vxpose.xlu0.b32.cont [2/16] 0.0, 128
        %947 = vxpose.xlu0.b32.cont [3/16] 0.0, 128
        %948 = vxpose.xlu0.b32.cont [4/16] 0.0, 128
        %949 = vxpose.xlu0.b32.cont [5/16] 0.0, 128
        %950 = vxpose.xlu0.b32.cont [6/16] 0.0, 128
        %951 = vxpose.xlu0.b32.cont [7/16] 0.0, 128
        %952 = vxpose.xlu0.b32.cont [8/16] 0.0, 128
        %953 = vxpose.xlu0.b32.cont [9/16] 0.0, 128
        %954 = vxpose.xlu0.b32.cont [10/16] 0.0, 128
        %955 = vxpose.xlu0.b32.cont [11/16] 0.0, 128
        %956 = vxpose.xlu0.b32.cont [12/16] 0.0, 128
        %957 = vxpose.xlu0.b32.cont [13/16] 0.0, 128
        %958 = vxpose.xlu0.b32.cont [14/16] 0.0, 128
        %959 = vxpose.xlu0.b32.cont [15/16] 0.0, 128
        %960 = vxpose.xlu0.b32.end [16/16] 0.0, 128
        %v961 = vpop.trf.xlu0
        %v962 = vpop.trf.xlu0
        %v963 = vpop.trf.xlu0
        %v964 = vpop.trf.xlu0
        %v965 = vpop.trf.xlu0
        %v966 = vpop.trf.xlu0
        %v967 = vpop.trf.xlu0
        %v968 = vpop.trf.xlu0
        %v969 = vpop.trf.xlu0
        %v970 = vpop.trf.xlu0
        %v971 = vpop.trf.xlu0
        %v972 = vpop.trf.xlu0
        %v973 = vpop.trf.xlu0
        %v974 = vpop.trf.xlu0
        %v975 = vpop.trf.xlu0
        %v976 = vpop.trf.xlu0
        %vm977 = vcmask 64512
        %v978 = vsel %vm977, %v627, 0
        %980 = vmatprep.subr.mxu0 0.0
        %981 = vmatpush1.msra.mxu0 %v865
        %982 = vmatprep.subr.mxu0 0.0
        %983 = vmatpush1.msra.mxu0 0.0
        %984 = vmatprep.subr.mxu0 0.0
        %985 = vmatpush1.msra.mxu0 0.0
        %986 = vmatprep.subr.mxu0 0.0
        %987 = vmatpush1.msra.mxu0 0.0
        %988 = vmatprep.subr.mxu0 0.0
        %989 = vmatpush1.msra.mxu0 0.0
        %990 = vmatprep.subr.mxu0 0.0
        %991 = vmatpush1.msra.mxu0 0.0
        %992 = vmatprep.subr.mxu0 0.0
        %993 = vmatpush1.msra.mxu0 0.0
        %994 = vmatprep.subr.mxu0 0.0
        %995 = vmatpush1.msra.mxu0 0.0
        %996 = vmatprep.subr.mxu0 0.0
        %997 = vmatpush1.msra.mxu0 0.0
        %998 = vmatprep.subr.mxu0 0.0
        %999 = vmatpush1.msra.mxu0 0.0
        %1000 = vmatprep.subr.mxu0 0.0
        %1001 = vmatpush1.msra.mxu0 0.0
        %1002 = vmatprep.subr.mxu0 0.0
        %1003 = vmatpush1.msra.mxu0 0.0
        %1004 = vmatprep.subr.mxu0 0.0
        %1005 = vmatpush1.msra.mxu0 0.0
        %1006 = vmatprep.subr.mxu0 0.0
        %1007 = vmatpush1.msra.mxu0 0.0
        %1008 = vmatprep.subr.mxu0 0.0
        %1009 = vmatpush1.msra.mxu0 0.0
        %1010 = vmatprep.subr.mxu0 0.0
        %1011 = vmatpush1.msra.mxu0 0.0
        %1012 = vmatprep.subr.mxu0 0.0
        %1013 = vmatpush1.msra.mxu0 0.0
        %1014 = vmatprep.subr.mxu0 0.0
        %1015 = vmatpush1.msra.mxu0 0.0
        %1016 = vmatprep.subr.mxu0 0.0
        %1017 = vmatpush1.msra.mxu0 0.0
        %1018 = vmatprep.subr.mxu0 0.0
        %1019 = vmatpush1.msra.mxu0 0.0
        %1020 = vmatprep.subr.mxu0 0.0
        %1021 = vmatpush1.msra.mxu0 0.0
        %1022 = vmatprep.subr.mxu0 0.0
        %1023 = vmatpush1.msra.mxu0 0.0
        %1024 = vmatprep.subr.mxu0 0.0
        %1025 = vmatpush1.msra.mxu0 0.0
        %1026 = vmatprep.subr.mxu0 0.0
        %1027 = vmatpush1.msra.mxu0 0.0
        %1028 = vmatprep.subr.mxu0 0.0
        %1029 = vmatpush1.msra.mxu0 0.0
        %1030 = vmatprep.subr.mxu0 0.0
        %1031 = vmatpush1.msra.mxu0 0.0
        %1032 = vmatprep.subr.mxu0 0.0
        %1033 = vmatpush1.msra.mxu0 0.0
        %1034 = vmatprep.subr.mxu0 0.0
        %1035 = vmatpush1.msra.mxu0 0.0
        %1036 = vmatprep.subr.mxu0 0.0
        %1037 = vmatpush1.msra.mxu0 0.0
        %1038 = vmatprep.subr.mxu0 0.0
        %1039 = vmatpush1.msra.mxu0 0.0
        %1040 = vmatprep.subr.mxu0 0.0
        %1041 = vmatpush1.msra.mxu0 0.0
        %1042 = vmatprep.subr.mxu0 0.0
        %1043 = vmatpush1.msra.mxu0 0.0
        %1044 = vmatprep.mubr.f32.mxu0 0.0
        %1045 = vmatmul.mubr.f32.gmra.mrb[0].mxu0 %v978
        %v1046 = vpop.f32.mrb[0].mxu0
        %v1047 = vadd.f32 0.0, %v1046
        %v1048 = vpop.f32.mrb[0].mxu0
        %1049 = vdwg.mxu0
        %v1050 = vsel %vm977, %v824, 0
        %1052 = vmatprep.subr.mxu0 0.0
        %1053 = vmatpush1.msra.mxu0 %v897
        %1054 = vmatprep.subr.mxu0 0.0
        %1055 = vmatpush1.msra.mxu0 0.0
        %1056 = vmatprep.subr.mxu0 0.0
        %1057 = vmatpush1.msra.mxu0 0.0
        %1058 = vmatprep.subr.mxu0 0.0
        %1059 = vmatpush1.msra.mxu0 0.0
        %1060 = vmatprep.subr.mxu0 0.0
        %1061 = vmatpush1.msra.mxu0 0.0
        %1062 = vmatprep.subr.mxu0 0.0
        %1063 = vmatpush1.msra.mxu0 0.0
        %1064 = vmatprep.subr.mxu0 0.0
        %1065 = vmatpush1.msra.mxu0 0.0
        %1066 = vmatprep.subr.mxu0 0.0
        %1067 = vmatpush1.msra.mxu0 0.0
        %1068 = vmatprep.subr.mxu0 0.0
        %1069 = vmatpush1.msra.mxu0 0.0
        %1070 = vmatprep.subr.mxu0 0.0
        %1071 = vmatpush1.msra.mxu0 0.0
        %1072 = vmatprep.subr.mxu0 0.0
        %1073 = vmatpush1.msra.mxu0 0.0
        %1074 = vmatprep.subr.mxu0 0.0
        %1075 = vmatpush1.msra.mxu0 0.0
        %1076 = vmatprep.subr.mxu0 0.0
        %1077 = vmatpush1.msra.mxu0 0.0
        %1078 = vmatprep.subr.mxu0 0.0
        %1079 = vmatpush1.msra.mxu0 0.0
        %1080 = vmatprep.subr.mxu0 0.0
        %1081 = vmatpush1.msra.mxu0 0.0
        %1082 = vmatprep.subr.mxu0 0.0
        %1083 = vmatpush1.msra.mxu0 0.0
        %1084 = vmatprep.subr.mxu0 0.0
        %1085 = vmatpush1.msra.mxu0 0.0
        %1086 = vmatprep.subr.mxu0 0.0
        %1087 = vmatpush1.msra.mxu0 0.0
        %1088 = vmatprep.subr.mxu0 0.0
        %1089 = vmatpush1.msra.mxu0 0.0
        %1090 = vmatprep.subr.mxu0 0.0
        %1091 = vmatpush1.msra.mxu0 0.0
        %1092 = vmatprep.subr.mxu0 0.0
        %1093 = vmatpush1.msra.mxu0 0.0
        %1094 = vmatprep.subr.mxu0 0.0
        %1095 = vmatpush1.msra.mxu0 0.0
        %1096 = vmatprep.subr.mxu0 0.0
        %1097 = vmatpush1.msra.mxu0 0.0
        %1098 = vmatprep.subr.mxu0 0.0
        %1099 = vmatpush1.msra.mxu0 0.0
        %1100 = vmatprep.subr.mxu0 0.0
        %1101 = vmatpush1.msra.mxu0 0.0
        %1102 = vmatprep.subr.mxu0 0.0
        %1103 = vmatpush1.msra.mxu0 0.0
        %1104 = vmatprep.subr.mxu0 0.0
        %1105 = vmatpush1.msra.mxu0 0.0
        %1106 = vmatprep.subr.mxu0 0.0
        %1107 = vmatpush1.msra.mxu0 0.0
        %1108 = vmatprep.subr.mxu0 0.0
        %1109 = vmatpush1.msra.mxu0 0.0
        %1110 = vmatprep.subr.mxu0 0.0
        %1111 = vmatpush1.msra.mxu0 0.0
        %1112 = vmatprep.subr.mxu0 0.0
        %1113 = vmatpush1.msra.mxu0 0.0
        %1114 = vmatprep.subr.mxu0 0.0
        %1115 = vmatpush1.msra.mxu0 0.0
        %1116 = vmatprep.mubr.f32.mxu0 0.0
        %1117 = vmatmul.mubr.f32.gmra.mrb[0].mxu0 %v1050
        %v1118 = vpop.f32.mrb[0].mxu0
        %v1119 = vadd.f32 0.0, %v1118
        %v1120 = vpop.f32.mrb[0].mxu0
        %1121 = vdwg.mxu0
        %v1122 = vsel %vm977, %v826, 0
        %1124 = vmatprep.subr.mxu0 0.0
        %1125 = vmatpush1.msra.mxu0 %v929
        %1126 = vmatprep.subr.mxu0 0.0
        %1127 = vmatpush1.msra.mxu0 0.0
        %1128 = vmatprep.subr.mxu0 0.0
        %1129 = vmatpush1.msra.mxu0 0.0
        %1130 = vmatprep.subr.mxu0 0.0
        %1131 = vmatpush1.msra.mxu0 0.0
        %1132 = vmatprep.subr.mxu0 0.0
        %1133 = vmatpush1.msra.mxu0 0.0
        %1134 = vmatprep.subr.mxu0 0.0
        %1135 = vmatpush1.msra.mxu0 0.0
        %1136 = vmatprep.subr.mxu0 0.0
        %1137 = vmatpush1.msra.mxu0 0.0
        %1138 = vmatprep.subr.mxu0 0.0
        %1139 = vmatpush1.msra.mxu0 0.0
        %1140 = vmatprep.subr.mxu0 0.0
        %1141 = vmatpush1.msra.mxu0 0.0
        %1142 = vmatprep.subr.mxu0 0.0
        %1143 = vmatpush1.msra.mxu0 0.0
        %1144 = vmatprep.subr.mxu0 0.0
        %1145 = vmatpush1.msra.mxu0 0.0
        %1146 = vmatprep.subr.mxu0 0.0
        %1147 = vmatpush1.msra.mxu0 0.0
        %1148 = vmatprep.subr.mxu0 0.0
        %1149 = vmatpush1.msra.mxu0 0.0
        %1150 = vmatprep.subr.mxu0 0.0
        %1151 = vmatpush1.msra.mxu0 0.0
        %1152 = vmatprep.subr.mxu0 0.0
        %1153 = vmatpush1.msra.mxu0 0.0
        %1154 = vmatprep.subr.mxu0 0.0
        %1155 = vmatpush1.msra.mxu0 0.0
        %1156 = vmatprep.subr.mxu0 0.0
        %1157 = vmatpush1.msra.mxu0 0.0
        %1158 = vmatprep.subr.mxu0 0.0
        %1159 = vmatpush1.msra.mxu0 0.0
        %1160 = vmatprep.subr.mxu0 0.0
        %1161 = vmatpush1.msra.mxu0 0.0
        %1162 = vmatprep.subr.mxu0 0.0
        %1163 = vmatpush1.msra.mxu0 0.0
        %1164 = vmatprep.subr.mxu0 0.0
        %1165 = vmatpush1.msra.mxu0 0.0
        %1166 = vmatprep.subr.mxu0 0.0
        %1167 = vmatpush1.msra.mxu0 0.0
        %1168 = vmatprep.subr.mxu0 0.0
        %1169 = vmatpush1.msra.mxu0 0.0
        %1170 = vmatprep.subr.mxu0 0.0
        %1171 = vmatpush1.msra.mxu0 0.0
        %1172 = vmatprep.subr.mxu0 0.0
        %1173 = vmatpush1.msra.mxu0 0.0
        %1174 = vmatprep.subr.mxu0 0.0
        %1175 = vmatpush1.msra.mxu0 0.0
        %1176 = vmatprep.subr.mxu0 0.0
        %1177 = vmatpush1.msra.mxu0 0.0
        %1178 = vmatprep.subr.mxu0 0.0
        %1179 = vmatpush1.msra.mxu0 0.0
        %1180 = vmatprep.subr.mxu0 0.0
        %1181 = vmatpush1.msra.mxu0 0.0
        %1182 = vmatprep.subr.mxu0 0.0
        %1183 = vmatpush1.msra.mxu0 0.0
        %1184 = vmatprep.subr.mxu0 0.0
        %1185 = vmatpush1.msra.mxu0 0.0
        %1186 = vmatprep.subr.mxu0 0.0
        %1187 = vmatpush1.msra.mxu0 0.0
        %1188 = vmatprep.mubr.f32.mxu0 0.0
        %1189 = vmatmul.mubr.f32.gmra.mrb[0].mxu0 %v1122
        %v1190 = vpop.f32.mrb[0].mxu0
        %v1191 = vadd.f32 0.0, %v1190
        %v1192 = vpop.f32.mrb[0].mxu0
        %1193 = vdwg.mxu0
        %v1194 = vsel %vm977, %v828, 0
        %1196 = vmatprep.subr.mxu0 0.0
        %1197 = vmatpush1.msra.mxu0 %v961
        %1198 = vmatprep.subr.mxu0 0.0
        %1199 = vmatpush1.msra.mxu0 0.0
        %1200 = vmatprep.subr.mxu0 0.0
        %1201 = vmatpush1.msra.mxu0 0.0
        %1202 = vmatprep.subr.mxu0 0.0
        %1203 = vmatpush1.msra.mxu0 0.0
        %1204 = vmatprep.subr.mxu0 0.0
        %1205 = vmatpush1.msra.mxu0 0.0
        %1206 = vmatprep.subr.mxu0 0.0
        %1207 = vmatpush1.msra.mxu0 0.0
        %1208 = vmatprep.subr.mxu0 0.0
        %1209 = vmatpush1.msra.mxu0 0.0
        %1210 = vmatprep.subr.mxu0 0.0
        %1211 = vmatpush1.msra.mxu0 0.0
        %1212 = vmatprep.subr.mxu0 0.0
        %1213 = vmatpush1.msra.mxu0 0.0
        %1214 = vmatprep.subr.mxu0 0.0
        %1215 = vmatpush1.msra.mxu0 0.0
        %1216 = vmatprep.subr.mxu0 0.0
        %1217 = vmatpush1.msra.mxu0 0.0
        %1218 = vmatprep.subr.mxu0 0.0
        %1219 = vmatpush1.msra.mxu0 0.0
        %1220 = vmatprep.subr.mxu0 0.0
        %1221 = vmatpush1.msra.mxu0 0.0
        %1222 = vmatprep.subr.mxu0 0.0
        %1223 = vmatpush1.msra.mxu0 0.0
        %1224 = vmatprep.subr.mxu0 0.0
        %1225 = vmatpush1.msra.mxu0 0.0
        %1226 = vmatprep.subr.mxu0 0.0
        %1227 = vmatpush1.msra.mxu0 0.0
        %1228 = vmatprep.subr.mxu0 0.0
        %1229 = vmatpush1.msra.mxu0 0.0
        %1230 = vmatprep.subr.mxu0 0.0
        %1231 = vmatpush1.msra.mxu0 0.0
        %1232 = vmatprep.subr.mxu0 0.0
        %1233 = vmatpush1.msra.mxu0 0.0
        %1234 = vmatprep.subr.mxu0 0.0
        %1235 = vmatpush1.msra.mxu0 0.0
        %1236 = vmatprep.subr.mxu0 0.0
        %1237 = vmatpush1.msra.mxu0 0.0
        %1238 = vmatprep.subr.mxu0 0.0
        %1239 = vmatpush1.msra.mxu0 0.0
        %1240 = vmatprep.subr.mxu0 0.0
        %1241 = vmatpush1.msra.mxu0 0.0
        %1242 = vmatprep.subr.mxu0 0.0
        %1243 = vmatpush1.msra.mxu0 0.0
        %1244 = vmatprep.subr.mxu0 0.0
        %1245 = vmatpush1.msra.mxu0 0.0
        %1246 = vmatprep.subr.mxu0 0.0
        %1247 = vmatpush1.msra.mxu0 0.0
        %1248 = vmatprep.subr.mxu0 0.0
        %1249 = vmatpush1.msra.mxu0 0.0
        %1250 = vmatprep.subr.mxu0 0.0
        %1251 = vmatpush1.msra.mxu0 0.0
        %1252 = vmatprep.subr.mxu0 0.0
        %1253 = vmatpush1.msra.mxu0 0.0
        %1254 = vmatprep.subr.mxu0 0.0
        %1255 = vmatpush1.msra.mxu0 0.0
        %1256 = vmatprep.subr.mxu0 0.0
        %1257 = vmatpush1.msra.mxu0 0.0
        %1258 = vmatprep.subr.mxu0 0.0
        %1259 = vmatpush1.msra.mxu0 0.0
        %1260 = vmatprep.mubr.f32.mxu0 0.0
        %1261 = vmatmul.mubr.f32.gmra.mrb[0].mxu0 %v1194
        %v1262 = vpop.f32.mrb[0].mxu0
        %v1263 = vadd.f32 0.0, %v1262
        %v1264 = vpop.f32.mrb[0].mxu0
        %1265 = vdwg.mxu0
        %v1266 = vsel %vm977, %v1047, -inf
        %1267 = vmax.xlane.f32.xlu0 %v1266
        %v1268 = vpop.xlane.xlu0 %1267
        %v1269 = vsel %vm977, %v1119, -inf
        %1270 = vmax.xlane.f32.xlu0 %v1269
        %v1271 = vpop.xlane.xlu0 %1270
        %v1272 = vsel %vm977, %v1191, -inf
        %1273 = vmax.xlane.f32.xlu0 %v1272
        %v1274 = vpop.xlane.xlu0 %1273
        %v1275 = vsel %vm977, %v1263, -inf
        %1276 = vmax.xlane.f32.xlu0 %v1275
        %v1277 = vpop.xlane.xlu0 %1276
        %v1278 = vsub.f32 %v1047, %v1268
        %v1279 = vsub.f32 %v1119, %v1271
        %v1280 = vsub.f32 %v1191, %v1274
        %v1281 = vsub.f32 %v1263, %v1277
        %v1282 = vmul.f32 %v1278, 1.442695
        %v1283 = vpow.pop %v1282
        %v1284 = vmul.f32 %v1279, 1.442695
        %v1285 = vpow.pop %v1284
        %v1286 = vmul.f32 %v1280, 1.442695
        %v1287 = vpow.pop %v1286
        %v1288 = vmul.f32 %v1281, 1.442695
        %v1289 = vpow.pop %v1288
        %v1290 = vsel %vm977, %v1283, 0.0
        %1291 = vadd.xlane.f32.xlu0 %v1290
        %v1292 = vpop.xlane.xlu0 %1291
        %v1293 = vsel %vm977, %v1285, 0.0
        %1294 = vadd.xlane.f32.xlu0 %v1293
        %v1295 = vpop.xlane.xlu0 %1294
        %v1296 = vsel %vm977, %v1287, 0.0
        %1297 = vadd.xlane.f32.xlu0 %v1296
        %v1298 = vpop.xlane.xlu0 %1297
        %v1299 = vsel %vm977, %v1289, 0.0
        %1300 = vadd.xlane.f32.xlu0 %v1299
        %v1301 = vpop.xlane.xlu0 %1300
        %v1302 = vrcp.pop %v1292
        %v1303 = vrcp.pop %v1295
        %v1304 = vrcp.pop %v1298
        %v1305 = vrcp.pop %v1301
        %v1306 = vmul.f32 %v1292, %v1302
        %v1307 = vmul.f32 %v1295, %v1303
        %v1308 = vmul.f32 %v1298, %v1304
        %v1309 = vmul.f32 %v1301, %v1305
        %v1310 = vsub.f32 2.0, %v1306
        %v1311 = vsub.f32 2.0, %v1307
        %v1312 = vsub.f32 2.0, %v1308
        %v1313 = vsub.f32 2.0, %v1309
        %v1314 = vmul.f32 %v1302, %v1310
        %v1315 = vmul.f32 %v1303, %v1311
        %v1316 = vmul.f32 %v1304, %v1312
        %v1317 = vmul.f32 %v1305, %v1313
        %v1318 = vmul.f32 %v1283, %v1314
        %v1319 = vmul.f32 %v1285, %v1315
        %v1320 = vmul.f32 %v1287, %v1316
        %v1321 = vmul.f32 %v1289, %v1317
        %1322 = vxpose.xlu0.b32.start [1/16] %v819, 128
        %1323 = vxpose.xlu0.b32.cont [2/16] 0.0, 128
        %1324 = vxpose.xlu0.b32.cont [3/16] 0.0, 128
        %1325 = vxpose.xlu0.b32.cont [4/16] 0.0, 128
        %1326 = vxpose.xlu0.b32.cont [5/16] 0.0, 128
        %1327 = vxpose.xlu0.b32.cont [6/16] 0.0, 128
        %1328 = vxpose.xlu0.b32.cont [7/16] 0.0, 128
        %1329 = vxpose.xlu0.b32.cont [8/16] 0.0, 128
        %1330 = vxpose.xlu0.b32.cont [9/16] 0.0, 128
        %1331 = vxpose.xlu0.b32.cont [10/16] 0.0, 128
        %1332 = vxpose.xlu0.b32.cont [11/16] 0.0, 128
        %1333 = vxpose.xlu0.b32.cont [12/16] 0.0, 128
        %1334 = vxpose.xlu0.b32.cont [13/16] 0.0, 128
        %1335 = vxpose.xlu0.b32.cont [14/16] 0.0, 128
        %1336 = vxpose.xlu0.b32.cont [15/16] 0.0, 128
        %1337 = vxpose.xlu0.b32.end [16/16] 0.0, 128
        %v1338 = vpop.trf.xlu0
        %v1339 = vpop.trf.xlu0
        %v1340 = vpop.trf.xlu0
        %v1341 = vpop.trf.xlu0
        %v1342 = vpop.trf.xlu0
        %v1343 = vpop.trf.xlu0
        %v1344 = vpop.trf.xlu0
        %v1345 = vpop.trf.xlu0
        %v1346 = vpop.trf.xlu0
        %v1347 = vpop.trf.xlu0
        %v1348 = vpop.trf.xlu0
        %v1349 = vpop.trf.xlu0
        %v1350 = vpop.trf.xlu0
        %v1351 = vpop.trf.xlu0
        %v1352 = vpop.trf.xlu0
        %v1353 = vpop.trf.xlu0
        %1354 = vxpose.xlu0.b32.start [1/16] %v841, 128
        %1355 = vxpose.xlu0.b32.cont [2/16] 0.0, 128
        %1356 = vxpose.xlu0.b32.cont [3/16] 0.0, 128
        %1357 = vxpose.xlu0.b32.cont [4/16] 0.0, 128
        %1358 = vxpose.xlu0.b32.cont [5/16] 0.0, 128
        %1359 = vxpose.xlu0.b32.cont [6/16] 0.0, 128
        %1360 = vxpose.xlu0.b32.cont [7/16] 0.0, 128
        %1361 = vxpose.xlu0.b32.cont [8/16] 0.0, 128
        %1362 = vxpose.xlu0.b32.cont [9/16] 0.0, 128
        %1363 = vxpose.xlu0.b32.cont [10/16] 0.0, 128
        %1364 = vxpose.xlu0.b32.cont [11/16] 0.0, 128
        %1365 = vxpose.xlu0.b32.cont [12/16] 0.0, 128
        %1366 = vxpose.xlu0.b32.cont [13/16] 0.0, 128
        %1367 = vxpose.xlu0.b32.cont [14/16] 0.0, 128
        %1368 = vxpose.xlu0.b32.cont [15/16] 0.0, 128
        %1369 = vxpose.xlu0.b32.end [16/16] 0.0, 128
        %v1370 = vpop.trf.xlu0
        %v1371 = vpop.trf.xlu0
        %v1372 = vpop.trf.xlu0
        %v1373 = vpop.trf.xlu0
        %v1374 = vpop.trf.xlu0
        %v1375 = vpop.trf.xlu0
        %v1376 = vpop.trf.xlu0
        %v1377 = vpop.trf.xlu0
        %v1378 = vpop.trf.xlu0
        %v1379 = vpop.trf.xlu0
        %v1380 = vpop.trf.xlu0
        %v1381 = vpop.trf.xlu0
        %v1382 = vpop.trf.xlu0
        %v1383 = vpop.trf.xlu0
        %v1384 = vpop.trf.xlu0
        %v1385 = vpop.trf.xlu0
        %1386 = vxpose.xlu0.b32.start [1/16] %v844, 128
        %1387 = vxpose.xlu0.b32.cont [2/16] 0.0, 128
        %1388 = vxpose.xlu0.b32.cont [3/16] 0.0, 128
        %1389 = vxpose.xlu0.b32.cont [4/16] 0.0, 128
        %1390 = vxpose.xlu0.b32.cont [5/16] 0.0, 128
        %1391 = vxpose.xlu0.b32.cont [6/16] 0.0, 128
        %1392 = vxpose.xlu0.b32.cont [7/16] 0.0, 128
        %1393 = vxpose.xlu0.b32.cont [8/16] 0.0, 128
        %1394 = vxpose.xlu0.b32.cont [9/16] 0.0, 128
        %1395 = vxpose.xlu0.b32.cont [10/16] 0.0, 128
        %1396 = vxpose.xlu0.b32.cont [11/16] 0.0, 128
        %1397 = vxpose.xlu0.b32.cont [12/16] 0.0, 128
        %1398 = vxpose.xlu0.b32.cont [13/16] 0.0, 128
        %1399 = vxpose.xlu0.b32.cont [14/16] 0.0, 128
        %1400 = vxpose.xlu0.b32.cont [15/16] 0.0, 128
        %1401 = vxpose.xlu0.b32.end [16/16] 0.0, 128
        %v1402 = vpop.trf.xlu0
        %v1403 = vpop.trf.xlu0
        %v1404 = vpop.trf.xlu0
        %v1405 = vpop.trf.xlu0
        %v1406 = vpop.trf.xlu0
        %v1407 = vpop.trf.xlu0
        %v1408 = vpop.trf.xlu0
        %v1409 = vpop.trf.xlu0
        %v1410 = vpop.trf.xlu0
        %v1411 = vpop.trf.xlu0
        %v1412 = vpop.trf.xlu0
        %v1413 = vpop.trf.xlu0
        %v1414 = vpop.trf.xlu0
        %v1415 = vpop.trf.xlu0
        %v1416 = vpop.trf.xlu0
        %v1417 = vpop.trf.xlu0
        %1418 = vxpose.xlu0.b32.start [1/16] %v847, 128
        %1419 = vxpose.xlu0.b32.cont [2/16] 0.0, 128
        %1420 = vxpose.xlu0.b32.cont [3/16] 0.0, 128
        %1421 = vxpose.xlu0.b32.cont [4/16] 0.0, 128
        %1422 = vxpose.xlu0.b32.cont [5/16] 0.0, 128
        %1423 = vxpose.xlu0.b32.cont [6/16] 0.0, 128
        %1424 = vxpose.xlu0.b32.cont [7/16] 0.0, 128
        %1425 = vxpose.xlu0.b32.cont [8/16] 0.0, 128
        %1426 = vxpose.xlu0.b32.cont [9/16] 0.0, 128
        %1427 = vxpose.xlu0.b32.cont [10/16] 0.0, 128
        %1428 = vxpose.xlu0.b32.cont [11/16] 0.0, 128
        %1429 = vxpose.xlu0.b32.cont [12/16] 0.0, 128
        %1430 = vxpose.xlu0.b32.cont [13/16] 0.0, 128
        %1431 = vxpose.xlu0.b32.cont [14/16] 0.0, 128
        %1432 = vxpose.xlu0.b32.cont [15/16] 0.0, 128
        %1433 = vxpose.xlu0.b32.end [16/16] 0.0, 128
        %v1434 = vpop.trf.xlu0
        %v1435 = vpop.trf.xlu0
        %v1436 = vpop.trf.xlu0
        %v1437 = vpop.trf.xlu0
        %v1438 = vpop.trf.xlu0
        %v1439 = vpop.trf.xlu0
        %v1440 = vpop.trf.xlu0
        %v1441 = vpop.trf.xlu0
        %v1442 = vpop.trf.xlu0
        %v1443 = vpop.trf.xlu0
        %v1444 = vpop.trf.xlu0
        %v1445 = vpop.trf.xlu0
        %v1446 = vpop.trf.xlu0
        %v1447 = vpop.trf.xlu0
        %v1448 = vpop.trf.xlu0
        %v1449 = vpop.trf.xlu0
        %v1451 = vsel %vm977, %v1338, 0
        %v1454 = vsel %vm977, %v1318, 0
        %1456 = vmatprep.subr.mxu0 0.0
        %1457 = vmatpush1.xpose.msra.mxu0 %v1454
        %1458 = vmatprep.subr.mxu0 0.0
        %1459 = vmatpush1.xpose.msra.mxu0 0.0
        %1460 = vmatprep.subr.mxu0 0.0
        %1461 = vmatpush1.xpose.msra.mxu0 0.0
        %1462 = vmatprep.subr.mxu0 0.0
        %1463 = vmatpush1.xpose.msra.mxu0 0.0
        %1464 = vmatprep.subr.mxu0 0.0
        %1465 = vmatpush1.xpose.msra.mxu0 0.0
        %1466 = vmatprep.subr.mxu0 0.0
        %1467 = vmatpush1.xpose.msra.mxu0 0.0
        %1468 = vmatprep.subr.mxu0 0.0
        %1469 = vmatpush1.xpose.msra.mxu0 0.0
        %1470 = vmatprep.subr.mxu0 0.0
        %1471 = vmatpush1.xpose.msra.mxu0 0.0
        %1472 = vmatprep.subr.mxu0 0.0
        %1473 = vmatpush1.xpose.msra.mxu0 0.0
        %1474 = vmatprep.subr.mxu0 0.0
        %1475 = vmatpush1.xpose.msra.mxu0 0.0
        %1476 = vmatprep.subr.mxu0 0.0
        %1477 = vmatpush1.xpose.msra.mxu0 0.0
        %1478 = vmatprep.subr.mxu0 0.0
        %1479 = vmatpush1.xpose.msra.mxu0 0.0
        %1480 = vmatprep.subr.mxu0 0.0
        %1481 = vmatpush1.xpose.msra.mxu0 0.0
        %1482 = vmatprep.subr.mxu0 0.0
        %1483 = vmatpush1.xpose.msra.mxu0 0.0
        %1484 = vmatprep.subr.mxu0 0.0
        %1485 = vmatpush1.xpose.msra.mxu0 0.0
        %1486 = vmatprep.subr.mxu0 0.0
        %1487 = vmatpush1.xpose.msra.mxu0 0.0
        %1488 = vmatprep.subr.mxu0 0.0
        %1489 = vmatpush1.xpose.msra.mxu0 0.0
        %1490 = vmatprep.subr.mxu0 0.0
        %1491 = vmatpush1.xpose.msra.mxu0 0.0
        %1492 = vmatprep.subr.mxu0 0.0
        %1493 = vmatpush1.xpose.msra.mxu0 0.0
        %1494 = vmatprep.subr.mxu0 0.0
        %1495 = vmatpush1.xpose.msra.mxu0 0.0
        %1496 = vmatprep.subr.mxu0 0.0
        %1497 = vmatpush1.xpose.msra.mxu0 0.0
        %1498 = vmatprep.subr.mxu0 0.0
        %1499 = vmatpush1.xpose.msra.mxu0 0.0
        %1500 = vmatprep.subr.mxu0 0.0
        %1501 = vmatpush1.xpose.msra.mxu0 0.0
        %1502 = vmatprep.subr.mxu0 0.0
        %1503 = vmatpush1.xpose.msra.mxu0 0.0
        %1504 = vmatprep.subr.mxu0 0.0
        %1505 = vmatpush1.xpose.msra.mxu0 0.0
        %1506 = vmatprep.subr.mxu0 0.0
        %1507 = vmatpush1.xpose.msra.mxu0 0.0
        %1508 = vmatprep.subr.mxu0 0.0
        %1509 = vmatpush1.xpose.msra.mxu0 0.0
        %1510 = vmatprep.subr.mxu0 0.0
        %1511 = vmatpush1.xpose.msra.mxu0 0.0
        %1512 = vmatprep.subr.mxu0 0.0
        %1513 = vmatpush1.xpose.msra.mxu0 0.0
        %1514 = vmatprep.subr.mxu0 0.0
        %1515 = vmatpush1.xpose.msra.mxu0 0.0
        %1516 = vmatprep.subr.mxu0 0.0
        %1517 = vmatpush1.xpose.msra.mxu0 0.0
        %1518 = vmatprep.subr.mxu0 0.0
        %1519 = vmatpush1.xpose.msra.mxu0 0.0
        %1520 = vmatprep.mubr.f32.mxu0 0.0
        %1521 = vmatmul.mubr.f32.gmra.mrb[0].mxu0 %v1451
        %v1522 = vpop.f32.mrb[0].mxu0
        %v1523 = vadd.f32 0.0, %v1522
        %v1524 = vpop.f32.mrb[0].mxu0
        %1525 = vdwg.mxu0
        %v1527 = vsel %vm977, %v1370, 0
        %v1530 = vsel %vm977, %v1319, 0
        %1532 = vmatprep.subr.mxu0 0.0
        %1533 = vmatpush1.xpose.msra.mxu0 %v1530
        %1534 = vmatprep.subr.mxu0 0.0
        %1535 = vmatpush1.xpose.msra.mxu0 0.0
        %1536 = vmatprep.subr.mxu0 0.0
        %1537 = vmatpush1.xpose.msra.mxu0 0.0
        %1538 = vmatprep.subr.mxu0 0.0
        %1539 = vmatpush1.xpose.msra.mxu0 0.0
        %1540 = vmatprep.subr.mxu0 0.0
        %1541 = vmatpush1.xpose.msra.mxu0 0.0
        %1542 = vmatprep.subr.mxu0 0.0
        %1543 = vmatpush1.xpose.msra.mxu0 0.0
        %1544 = vmatprep.subr.mxu0 0.0
        %1545 = vmatpush1.xpose.msra.mxu0 0.0
        %1546 = vmatprep.subr.mxu0 0.0
        %1547 = vmatpush1.xpose.msra.mxu0 0.0
        %1548 = vmatprep.subr.mxu0 0.0
        %1549 = vmatpush1.xpose.msra.mxu0 0.0
        %1550 = vmatprep.subr.mxu0 0.0
        %1551 = vmatpush1.xpose.msra.mxu0 0.0
        %1552 = vmatprep.subr.mxu0 0.0
        %1553 = vmatpush1.xpose.msra.mxu0 0.0
        %1554 = vmatprep.subr.mxu0 0.0
        %1555 = vmatpush1.xpose.msra.mxu0 0.0
        %1556 = vmatprep.subr.mxu0 0.0
        %1557 = vmatpush1.xpose.msra.mxu0 0.0
        %1558 = vmatprep.subr.mxu0 0.0
        %1559 = vmatpush1.xpose.msra.mxu0 0.0
        %1560 = vmatprep.subr.mxu0 0.0
        %1561 = vmatpush1.xpose.msra.mxu0 0.0
        %1562 = vmatprep.subr.mxu0 0.0
        %1563 = vmatpush1.xpose.msra.mxu0 0.0
        %1564 = vmatprep.subr.mxu0 0.0
        %1565 = vmatpush1.xpose.msra.mxu0 0.0
        %1566 = vmatprep.subr.mxu0 0.0
        %1567 = vmatpush1.xpose.msra.mxu0 0.0
        %1568 = vmatprep.subr.mxu0 0.0
        %1569 = vmatpush1.xpose.msra.mxu0 0.0
        %1570 = vmatprep.subr.mxu0 0.0
        %1571 = vmatpush1.xpose.msra.mxu0 0.0
        %1572 = vmatprep.subr.mxu0 0.0
        %1573 = vmatpush1.xpose.msra.mxu0 0.0
        %1574 = vmatprep.subr.mxu0 0.0
        %1575 = vmatpush1.xpose.msra.mxu0 0.0
        %1576 = vmatprep.subr.mxu0 0.0
        %1577 = vmatpush1.xpose.msra.mxu0 0.0
        %1578 = vmatprep.subr.mxu0 0.0
        %1579 = vmatpush1.xpose.msra.mxu0 0.0
        %1580 = vmatprep.subr.mxu0 0.0
        %1581 = vmatpush1.xpose.msra.mxu0 0.0
        %1582 = vmatprep.subr.mxu0 0.0
        %1583 = vmatpush1.xpose.msra.mxu0 0.0
        %1584 = vmatprep.subr.mxu0 0.0
        %1585 = vmatpush1.xpose.msra.mxu0 0.0
        %1586 = vmatprep.subr.mxu0 0.0
        %1587 = vmatpush1.xpose.msra.mxu0 0.0
        %1588 = vmatprep.subr.mxu0 0.0
        %1589 = vmatpush1.xpose.msra.mxu0 0.0
        %1590 = vmatprep.subr.mxu0 0.0
        %1591 = vmatpush1.xpose.msra.mxu0 0.0
        %1592 = vmatprep.subr.mxu0 0.0
        %1593 = vmatpush1.xpose.msra.mxu0 0.0
        %1594 = vmatprep.subr.mxu0 0.0
        %1595 = vmatpush1.xpose.msra.mxu0 0.0
        %1596 = vmatprep.mubr.f32.mxu0 0.0
        %1597 = vmatmul.mubr.f32.gmra.mrb[0].mxu0 %v1527
        %v1598 = vpop.f32.mrb[0].mxu0
        %v1599 = vadd.f32 0.0, %v1598
        %v1600 = vpop.f32.mrb[0].mxu0
        %1601 = vdwg.mxu0
        %v1603 = vsel %vm977, %v1402, 0
        %v1606 = vsel %vm977, %v1320, 0
        %1608 = vmatprep.subr.mxu0 0.0
        %1609 = vmatpush1.xpose.msra.mxu0 %v1606
        %1610 = vmatprep.subr.mxu0 0.0
        %1611 = vmatpush1.xpose.msra.mxu0 0.0
        %1612 = vmatprep.subr.mxu0 0.0
        %1613 = vmatpush1.xpose.msra.mxu0 0.0
        %1614 = vmatprep.subr.mxu0 0.0
        %1615 = vmatpush1.xpose.msra.mxu0 0.0
        %1616 = vmatprep.subr.mxu0 0.0
        %1617 = vmatpush1.xpose.msra.mxu0 0.0
        %1618 = vmatprep.subr.mxu0 0.0
        %1619 = vmatpush1.xpose.msra.mxu0 0.0
        %1620 = vmatprep.subr.mxu0 0.0
        %1621 = vmatpush1.xpose.msra.mxu0 0.0
        %1622 = vmatprep.subr.mxu0 0.0
        %1623 = vmatpush1.xpose.msra.mxu0 0.0
        %1624 = vmatprep.subr.mxu0 0.0
        %1625 = vmatpush1.xpose.msra.mxu0 0.0
        %1626 = vmatprep.subr.mxu0 0.0
        %1627 = vmatpush1.xpose.msra.mxu0 0.0
        %1628 = vmatprep.subr.mxu0 0.0
        %1629 = vmatpush1.xpose.msra.mxu0 0.0
        %1630 = vmatprep.subr.mxu0 0.0
        %1631 = vmatpush1.xpose.msra.mxu0 0.0
        %1632 = vmatprep.subr.mxu0 0.0
        %1633 = vmatpush1.xpose.msra.mxu0 0.0
        %1634 = vmatprep.subr.mxu0 0.0
        %1635 = vmatpush1.xpose.msra.mxu0 0.0
        %1636 = vmatprep.subr.mxu0 0.0
        %1637 = vmatpush1.xpose.msra.mxu0 0.0
        %1638 = vmatprep.subr.mxu0 0.0
        %1639 = vmatpush1.xpose.msra.mxu0 0.0
        %1640 = vmatprep.subr.mxu0 0.0
        %1641 = vmatpush1.xpose.msra.mxu0 0.0
        %1642 = vmatprep.subr.mxu0 0.0
        %1643 = vmatpush1.xpose.msra.mxu0 0.0
        %1644 = vmatprep.subr.mxu0 0.0
        %1645 = vmatpush1.xpose.msra.mxu0 0.0
        %1646 = vmatprep.subr.mxu0 0.0
        %1647 = vmatpush1.xpose.msra.mxu0 0.0
        %1648 = vmatprep.subr.mxu0 0.0
        %1649 = vmatpush1.xpose.msra.mxu0 0.0
        %1650 = vmatprep.subr.mxu0 0.0
        %1651 = vmatpush1.xpose.msra.mxu0 0.0
        %1652 = vmatprep.subr.mxu0 0.0
        %1653 = vmatpush1.xpose.msra.mxu0 0.0
        %1654 = vmatprep.subr.mxu0 0.0
        %1655 = vmatpush1.xpose.msra.mxu0 0.0
        %1656 = vmatprep.subr.mxu0 0.0
        %1657 = vmatpush1.xpose.msra.mxu0 0.0
        %1658 = vmatprep.subr.mxu0 0.0
        %1659 = vmatpush1.xpose.msra.mxu0 0.0
        %1660 = vmatprep.subr.mxu0 0.0
        %1661 = vmatpush1.xpose.msra.mxu0 0.0
        %1662 = vmatprep.subr.mxu0 0.0
        %1663 = vmatpush1.xpose.msra.mxu0 0.0
        %1664 = vmatprep.subr.mxu0 0.0
        %1665 = vmatpush1.xpose.msra.mxu0 0.0
        %1666 = vmatprep.subr.mxu0 0.0
        %1667 = vmatpush1.xpose.msra.mxu0 0.0
        %1668 = vmatprep.subr.mxu0 0.0
        %1669 = vmatpush1.xpose.msra.mxu0 0.0
        %1670 = vmatprep.subr.mxu0 0.0
        %1671 = vmatpush1.xpose.msra.mxu0 0.0
        %1672 = vmatprep.mubr.f32.mxu0 0.0
        %1673 = vmatmul.mubr.f32.gmra.mrb[0].mxu0 %v1603
        %v1674 = vpop.f32.mrb[0].mxu0
        %v1675 = vadd.f32 0.0, %v1674
        %v1676 = vpop.f32.mrb[0].mxu0
        %1677 = vdwg.mxu0
        %v1679 = vsel %vm977, %v1434, 0
        %v1682 = vsel %vm977, %v1321, 0
        %1684 = vmatprep.subr.mxu0 0.0
        %1685 = vmatpush1.xpose.msra.mxu0 %v1682
        %1686 = vmatprep.subr.mxu0 0.0
        %1687 = vmatpush1.xpose.msra.mxu0 0.0
        %1688 = vmatprep.subr.mxu0 0.0
        %1689 = vmatpush1.xpose.msra.mxu0 0.0
        %1690 = vmatprep.subr.mxu0 0.0
        %1691 = vmatpush1.xpose.msra.mxu0 0.0
        %1692 = vmatprep.subr.mxu0 0.0
        %1693 = vmatpush1.xpose.msra.mxu0 0.0
        %1694 = vmatprep.subr.mxu0 0.0
        %1695 = vmatpush1.xpose.msra.mxu0 0.0
        %1696 = vmatprep.subr.mxu0 0.0
        %1697 = vmatpush1.xpose.msra.mxu0 0.0
        %1698 = vmatprep.subr.mxu0 0.0
        %1699 = vmatpush1.xpose.msra.mxu0 0.0
        %1700 = vmatprep.subr.mxu0 0.0
        %1701 = vmatpush1.xpose.msra.mxu0 0.0
        %1702 = vmatprep.subr.mxu0 0.0
        %1703 = vmatpush1.xpose.msra.mxu0 0.0
        %1704 = vmatprep.subr.mxu0 0.0
        %1705 = vmatpush1.xpose.msra.mxu0 0.0
        %1706 = vmatprep.subr.mxu0 0.0
        %1707 = vmatpush1.xpose.msra.mxu0 0.0
        %1708 = vmatprep.subr.mxu0 0.0
        %1709 = vmatpush1.xpose.msra.mxu0 0.0
        %1710 = vmatprep.subr.mxu0 0.0
        %1711 = vmatpush1.xpose.msra.mxu0 0.0
        %1712 = vmatprep.subr.mxu0 0.0
        %1713 = vmatpush1.xpose.msra.mxu0 0.0
        %1714 = vmatprep.subr.mxu0 0.0
        %1715 = vmatpush1.xpose.msra.mxu0 0.0
        %1716 = vmatprep.subr.mxu0 0.0
        %1717 = vmatpush1.xpose.msra.mxu0 0.0
        %1718 = vmatprep.subr.mxu0 0.0
        %1719 = vmatpush1.xpose.msra.mxu0 0.0
        %1720 = vmatprep.subr.mxu0 0.0
        %1721 = vmatpush1.xpose.msra.mxu0 0.0
        %1722 = vmatprep.subr.mxu0 0.0
        %1723 = vmatpush1.xpose.msra.mxu0 0.0
        %1724 = vmatprep.subr.mxu0 0.0
        %1725 = vmatpush1.xpose.msra.mxu0 0.0
        %1726 = vmatprep.subr.mxu0 0.0
        %1727 = vmatpush1.xpose.msra.mxu0 0.0
        %1728 = vmatprep.subr.mxu0 0.0
        %1729 = vmatpush1.xpose.msra.mxu0 0.0
        %1730 = vmatprep.subr.mxu0 0.0
        %1731 = vmatpush1.xpose.msra.mxu0 0.0
        %1732 = vmatprep.subr.mxu0 0.0
        %1733 = vmatpush1.xpose.msra.mxu0 0.0
        %1734 = vmatprep.subr.mxu0 0.0
        %1735 = vmatpush1.xpose.msra.mxu0 0.0
        %1736 = vmatprep.subr.mxu0 0.0
        %1737 = vmatpush1.xpose.msra.mxu0 0.0
        %1738 = vmatprep.subr.mxu0 0.0
        %1739 = vmatpush1.xpose.msra.mxu0 0.0
        %1740 = vmatprep.subr.mxu0 0.0
        %1741 = vmatpush1.xpose.msra.mxu0 0.0
        %1742 = vmatprep.subr.mxu0 0.0
        %1743 = vmatpush1.xpose.msra.mxu0 0.0
        %1744 = vmatprep.subr.mxu0 0.0
        %1745 = vmatpush1.xpose.msra.mxu0 0.0
        %1746 = vmatprep.subr.mxu0 0.0
        %1747 = vmatpush1.xpose.msra.mxu0 0.0
        %1748 = vmatprep.mubr.f32.mxu0 0.0
        %1749 = vmatmul.mubr.f32.gmra.mrb[0].mxu0 %v1679
        %v1750 = vpop.f32.mrb[0].mxu0
        %v1751 = vadd.f32 0.0, %v1750
        %v1752 = vpop.f32.mrb[0].mxu0
        %1753 = vdwg.mxu0
        %1754 = vxpose.xlu0.b32.start [1/16] %v1523, 128
        %1755 = vxpose.xlu0.b32.cont [2/16] 0.0, 128
        %1756 = vxpose.xlu0.b32.cont [3/16] 0.0, 128
        %1757 = vxpose.xlu0.b32.cont [4/16] 0.0, 128
        %1758 = vxpose.xlu0.b32.cont [5/16] 0.0, 128
        %1759 = vxpose.xlu0.b32.cont [6/16] 0.0, 128
        %1760 = vxpose.xlu0.b32.cont [7/16] 0.0, 128
        %1761 = vxpose.xlu0.b32.cont [8/16] 0.0, 128
        %1762 = vxpose.xlu0.b32.cont [9/16] 0.0, 128
        %1763 = vxpose.xlu0.b32.cont [10/16] 0.0, 128
        %1764 = vxpose.xlu0.b32.cont [11/16] 0.0, 128
        %1765 = vxpose.xlu0.b32.cont [12/16] 0.0, 128
        %1766 = vxpose.xlu0.b32.cont [13/16] 0.0, 128
        %1767 = vxpose.xlu0.b32.cont [14/16] 0.0, 128
        %1768 = vxpose.xlu0.b32.cont [15/16] 0.0, 128
        %1769 = vxpose.xlu0.b32.end [16/16] 0.0, 128
        %v1770 = vpop.trf.xlu0
        %v1771 = vpop.trf.xlu0
        %v1772 = vpop.trf.xlu0
        %v1773 = vpop.trf.xlu0
        %v1774 = vpop.trf.xlu0
        %v1775 = vpop.trf.xlu0
        %v1776 = vpop.trf.xlu0
        %v1777 = vpop.trf.xlu0
        %v1778 = vpop.trf.xlu0
        %v1779 = vpop.trf.xlu0
        %v1780 = vpop.trf.xlu0
        %v1781 = vpop.trf.xlu0
        %v1782 = vpop.trf.xlu0
        %v1783 = vpop.trf.xlu0
        %v1784 = vpop.trf.xlu0
        %v1785 = vpop.trf.xlu0
        %1786 = vxpose.xlu0.b32.start [1/16] %v1599, 128
        %1787 = vxpose.xlu0.b32.cont [2/16] 0.0, 128
        %1788 = vxpose.xlu0.b32.cont [3/16] 0.0, 128
        %1789 = vxpose.xlu0.b32.cont [4/16] 0.0, 128
        %1790 = vxpose.xlu0.b32.cont [5/16] 0.0, 128
        %1791 = vxpose.xlu0.b32.cont [6/16] 0.0, 128
        %1792 = vxpose.xlu0.b32.cont [7/16] 0.0, 128
        %1793 = vxpose.xlu0.b32.cont [8/16] 0.0, 128
        %1794 = vxpose.xlu0.b32.cont [9/16] 0.0, 128
        %1795 = vxpose.xlu0.b32.cont [10/16] 0.0, 128
        %1796 = vxpose.xlu0.b32.cont [11/16] 0.0, 128
        %1797 = vxpose.xlu0.b32.cont [12/16] 0.0, 128
        %1798 = vxpose.xlu0.b32.cont [13/16] 0.0, 128
        %1799 = vxpose.xlu0.b32.cont [14/16] 0.0, 128
        %1800 = vxpose.xlu0.b32.cont [15/16] 0.0, 128
        %1801 = vxpose.xlu0.b32.end [16/16] 0.0, 128
        %v1802 = vpop.trf.xlu0
        %v1803 = vpop.trf.xlu0
        %v1804 = vpop.trf.xlu0
        %v1805 = vpop.trf.xlu0
        %v1806 = vpop.trf.xlu0
        %v1807 = vpop.trf.xlu0
        %v1808 = vpop.trf.xlu0
        %v1809 = vpop.trf.xlu0
        %v1810 = vpop.trf.xlu0
        %v1811 = vpop.trf.xlu0
        %v1812 = vpop.trf.xlu0
        %v1813 = vpop.trf.xlu0
        %v1814 = vpop.trf.xlu0
        %v1815 = vpop.trf.xlu0
        %v1816 = vpop.trf.xlu0
        %v1817 = vpop.trf.xlu0
        %1818 = vxpose.xlu0.b32.start [1/16] %v1675, 128
        %1819 = vxpose.xlu0.b32.cont [2/16] 0.0, 128
        %1820 = vxpose.xlu0.b32.cont [3/16] 0.0, 128
        %1821 = vxpose.xlu0.b32.cont [4/16] 0.0, 128
        %1822 = vxpose.xlu0.b32.cont [5/16] 0.0, 128
        %1823 = vxpose.xlu0.b32.cont [6/16] 0.0, 128
        %1824 = vxpose.xlu0.b32.cont [7/16] 0.0, 128
        %1825 = vxpose.xlu0.b32.cont [8/16] 0.0, 128
        %1826 = vxpose.xlu0.b32.cont [9/16] 0.0, 128
        %1827 = vxpose.xlu0.b32.cont [10/16] 0.0, 128
        %1828 = vxpose.xlu0.b32.cont [11/16] 0.0, 128
        %1829 = vxpose.xlu0.b32.cont [12/16] 0.0, 128
        %1830 = vxpose.xlu0.b32.cont [13/16] 0.0, 128
        %1831 = vxpose.xlu0.b32.cont [14/16] 0.0, 128
        %1832 = vxpose.xlu0.b32.cont [15/16] 0.0, 128
        %1833 = vxpose.xlu0.b32.end [16/16] 0.0, 128
        %v1834 = vpop.trf.xlu0
        %v1835 = vpop.trf.xlu0
        %v1836 = vpop.trf.xlu0
        %v1837 = vpop.trf.xlu0
        %v1838 = vpop.trf.xlu0
        %v1839 = vpop.trf.xlu0
        %v1840 = vpop.trf.xlu0
        %v1841 = vpop.trf.xlu0
        %v1842 = vpop.trf.xlu0
        %v1843 = vpop.trf.xlu0
        %v1844 = vpop.trf.xlu0
        %v1845 = vpop.trf.xlu0
        %v1846 = vpop.trf.xlu0
        %v1847 = vpop.trf.xlu0
        %v1848 = vpop.trf.xlu0
        %v1849 = vpop.trf.xlu0
        %1850 = vxpose.xlu0.b32.start [1/16] %v1751, 128
        %1851 = vxpose.xlu0.b32.cont [2/16] 0.0, 128
        %1852 = vxpose.xlu0.b32.cont [3/16] 0.0, 128
        %1853 = vxpose.xlu0.b32.cont [4/16] 0.0, 128
        %1854 = vxpose.xlu0.b32.cont [5/16] 0.0, 128
        %1855 = vxpose.xlu0.b32.cont [6/16] 0.0, 128
        %1856 = vxpose.xlu0.b32.cont [7/16] 0.0, 128
        %1857 = vxpose.xlu0.b32.cont [8/16] 0.0, 128
        %1858 = vxpose.xlu0.b32.cont [9/16] 0.0, 128
        %1859 = vxpose.xlu0.b32.cont [10/16] 0.0, 128
        %1860 = vxpose.xlu0.b32.cont [11/16] 0.0, 128
        %1861 = vxpose.xlu0.b32.cont [12/16] 0.0, 128
        %1862 = vxpose.xlu0.b32.cont [13/16] 0.0, 128
        %1863 = vxpose.xlu0.b32.cont [14/16] 0.0, 128
        %1864 = vxpose.xlu0.b32.cont [15/16] 0.0, 128
        %1865 = vxpose.xlu0.b32.end [16/16] 0.0, 128
        %v1866 = vpop.trf.xlu0
        %v1867 = vpop.trf.xlu0
        %v1868 = vpop.trf.xlu0
        %v1869 = vpop.trf.xlu0
        %v1870 = vpop.trf.xlu0
        %v1871 = vpop.trf.xlu0
        %v1872 = vpop.trf.xlu0
        %v1873 = vpop.trf.xlu0
        %v1874 = vpop.trf.xlu0
        %v1875 = vpop.trf.xlu0
        %v1876 = vpop.trf.xlu0
        %v1877 = vpop.trf.xlu0
        %v1878 = vpop.trf.xlu0
        %v1879 = vpop.trf.xlu0
        %v1880 = vpop.trf.xlu0
        %v1881 = vpop.trf.xlu0
        %v1882 = vcombine.low %v1770, %v1834
        %v1883 = vcombine.high %v1770, %v1834
        %v1885 = vunpack.c.l.s4 1983009808
        %v1886 = vunpack.c.0.s8 %v1885
        %v1887 = vlaneseq
        %v1888 = vshrl.u32 %v1887, 7
        %v1889 = vsub.s32 %v1886, %v1888
        %v1890 = vrot.slane %v1882, %v1889
        %v1892 = vunpack.c.l.s4 1983009808
        %v1893 = vunpack.c.0.s8 %v1892
        %v1894 = vlaneseq
        %v1895 = vshrl.u32 %v1894, 7
        %v1896 = vsub.s32 %v1893, %v1895
        %v1897 = vrot.slane %v1883, %v1896
        %v1898 = vcombine.low %v1802, %v1866
        %v1899 = vcombine.high %v1802, %v1866
        %v1901 = vunpack.c.l.s4 1983009808
        %v1902 = vunpack.c.0.s8 %v1901
        %v1903 = vlaneseq
        %v1904 = vshrl.u32 %v1903, 7
        %v1905 = vsub.s32 %v1902, %v1904
        %v1906 = vrot.slane %v1898, %v1905
        %v1908 = vunpack.c.l.s4 1983009808
        %v1909 = vunpack.c.0.s8 %v1908
        %v1910 = vlaneseq
        %v1911 = vshrl.u32 %v1910, 7
        %v1912 = vsub.s32 %v1909, %v1911
        %v1913 = vrot.slane %v1899, %v1912
        %v1914 = vcombine.low %v1890, %v1906
        %v1915 = vcombine.high %v1890, %v1906
        %v1917 = vunpack.c.l.s4 1934713408
        %v1918 = vunpack.c.0.s8 %v1917
        %v1919 = vlaneseq
        %v1920 = vshrl.u32 %v1919, 7
        %v1921 = vsub.s32 %v1918, %v1920
        %v1922 = vrot.slane %v1914, %v1921
        %v1924 = vunpack.c.l.s4 1934713408
        %v1925 = vunpack.c.0.s8 %v1924
        %v1926 = vlaneseq
        %v1927 = vshrl.u32 %v1926, 7
        %v1928 = vsub.s32 %v1925, %v1927
        %v1929 = vrot.slane %v1915, %v1928
        %v1930 = vcombine.low %v1897, %v1913
        %v1931 = vcombine.high %v1897, %v1913
        %v1933 = vunpack.c.l.s4 1934713408
        %v1934 = vunpack.c.0.s8 %v1933
        %v1935 = vlaneseq
        %v1936 = vshrl.u32 %v1935, 7
        %v1937 = vsub.s32 %v1934, %v1936
        %v1938 = vrot.slane %v1930, %v1937
        %v1940 = vunpack.c.l.s4 1934713408
        %v1941 = vunpack.c.0.s8 %v1940
        %v1942 = vlaneseq
        %v1943 = vshrl.u32 %v1942, 7
        %v1944 = vsub.s32 %v1941, %v1943
        %v1945 = vrot.slane %v1931, %v1944
        %v1946 = vcombine.high %v1922, 0.0
        %v1947 = vcombine.high %v1929, 0.0
        %v1948 = vcombine.high %v1938, 0.0
        %v1949 = vcombine.high %v1945, 0.0
        %v1950 = vcombine.low %v1922, %v1929
        %v1952 = vunpack.c.l.s4 1983009808
        %v1953 = vunpack.c.0.s8 %v1952
        %v1954 = vlaneseq
        %v1955 = vshrl.u32 %v1954, 7
        %v1956 = vsub.s32 %v1953, %v1955
        %v1957 = vrot.slane %v1950, %v1956
        %v1958 = vcombine.low %v1946, %v1947
        %v1960 = vunpack.c.l.s4 1983009808
        %v1961 = vunpack.c.0.s8 %v1960
        %v1962 = vlaneseq
        %v1963 = vshrl.u32 %v1962, 7
        %v1964 = vsub.s32 %v1961, %v1963
        %v1965 = vrot.slane %v1958, %v1964
        %v1966 = vcombine.low %v1938, %v1945
        %v1968 = vunpack.c.l.s4 1983009808
        %v1969 = vunpack.c.0.s8 %v1968
        %v1970 = vlaneseq
        %v1971 = vshrl.u32 %v1970, 7
        %v1972 = vsub.s32 %v1969, %v1971
        %v1973 = vrot.slane %v1966, %v1972
        %v1974 = vcombine.low %v1948, %v1949
        %v1976 = vunpack.c.l.s4 1983009808
        %v1977 = vunpack.c.0.s8 %v1976
        %v1978 = vlaneseq
        %v1979 = vshrl.u32 %v1978, 7
        %v1980 = vsub.s32 %v1977, %v1979
        %v1981 = vrot.slane %v1974, %v1980
        %v1982 = vcombine.low %v1957, %v1965
        %v1983 = vcombine.high %v1957, %v1965
        %v1985 = vunpack.c.l.s4 1934713408
        %v1986 = vunpack.c.0.s8 %v1985
        %v1987 = vlaneseq
        %v1988 = vshrl.u32 %v1987, 7
        %v1989 = vsub.s32 %v1986, %v1988
        %v1990 = vrot.slane %v1982, %v1989
        %v1992 = vunpack.c.l.s4 1934713408
        %v1993 = vunpack.c.0.s8 %v1992
        %v1994 = vlaneseq
        %v1995 = vshrl.u32 %v1994, 7
        %v1996 = vsub.s32 %v1993, %v1995
        %v1997 = vrot.slane %v1983, %v1996
        %v1998 = vcombine.low %v1973, %v1981
        %v1999 = vcombine.high %v1973, %v1981
        %v2001 = vunpack.c.l.s4 1934713408
        %v2002 = vunpack.c.0.s8 %v2001
        %v2003 = vlaneseq
        %v2004 = vshrl.u32 %v2003, 7
        %v2005 = vsub.s32 %v2002, %v2004
        %v2006 = vrot.slane %v1998, %v2005
        %v2008 = vunpack.c.l.s4 1934713408
        %v2009 = vunpack.c.0.s8 %v2008
        %v2010 = vlaneseq
        %v2011 = vshrl.u32 %v2010, 7
        %v2012 = vsub.s32 %v2009, %v2011
        %v2013 = vrot.slane %v1999, %v2012
        %v2014 = vcombine.low %v1990, %v2006
        %v2015 = vcombine.high %v1990, %v2006
        %v2016 = vcombine.low %v1997, %v2013
        %v2017 = vcombine.high %v1997, %v2013
        %2019 = vrot.lane.b32.xlu0 %v2015, 8
        %v2020 = vpop.permute.xlu0 %2019
        %2023 = vrot.lane.b32.xlu0 %v2016, 16
        %v2024 = vpop.permute.xlu0 %2023
        %2027 = vrot.lane.b32.xlu0 %v2017, 24
        %v2028 = vpop.permute.xlu0 %2027
        %v2030 = vsel %vm977, %v2014, %v2020
        %vm2031 = vcmask 130048
        %v2032 = vsel %vm2031, %v2030, %v2024
        %vm2033 = vcmask 195584
        %v2034 = vsel %vm2033, %v2032, %v2028
        %v2035 = vld [vmem:[%s9] sm:$0xff]
        %v2036 = vld [vmem:[%s9 + $0x8] sm:$0xff]
        %v2037 = vld [vmem:[%s9 + $0x10] sm:$0xff]
        %v2038 = vld [vmem:[%s9 + $0x18] sm:$0xff]
        %v2039 = vld [vmem:[%s10] sm:$0x1]
        %v2041 = vlaneseq
        %v2042 = vshrl.u32 %v2041, 7
        %v2043 = vsub.s32 0, %v2042
        %v2044 = vrot.slane %v2039, %v2043
        %v2047 = vsel %vm541, %v2034, 0
        %v2050 = vsel %vm541, %v2035, 0
        %v2053 = vsel %vm541, %v2036, 0
        %v2056 = vsel %vm541, %v2037, 0
        %v2059 = vsel %vm541, %v2038, 0
        %2061 = vmatprep.subr.mxu0 0.0
        %2062 = vmatpush1.xpose.msra.mxu0 %v2050
        %2063 = vmatprep.subr.mxu0 0.0
        %2064 = vmatpush1.xpose.msra.mxu0 %v2053
        %2065 = vmatprep.subr.mxu0 0.0
        %2066 = vmatpush1.xpose.msra.mxu0 %v2056
        %2067 = vmatprep.subr.mxu0 0.0
        %2068 = vmatpush1.xpose.msra.mxu0 %v2059
        %2069 = vmatprep.subr.mxu0 0.0
        %2070 = vmatpush1.xpose.msra.mxu0 0.0
        %2071 = vmatprep.subr.mxu0 0.0
        %2072 = vmatpush1.xpose.msra.mxu0 0.0
        %2073 = vmatprep.subr.mxu0 0.0
        %2074 = vmatpush1.xpose.msra.mxu0 0.0
        %2075 = vmatprep.subr.mxu0 0.0
        %2076 = vmatpush1.xpose.msra.mxu0 0.0
        %2077 = vmatprep.subr.mxu0 0.0
        %2078 = vmatpush1.xpose.msra.mxu0 0.0
        %2079 = vmatprep.subr.mxu0 0.0
        %2080 = vmatpush1.xpose.msra.mxu0 0.0
        %2081 = vmatprep.subr.mxu0 0.0
        %2082 = vmatpush1.xpose.msra.mxu0 0.0
        %2083 = vmatprep.subr.mxu0 0.0
        %2084 = vmatpush1.xpose.msra.mxu0 0.0
        %2085 = vmatprep.subr.mxu0 0.0
        %2086 = vmatpush1.xpose.msra.mxu0 0.0
        %2087 = vmatprep.subr.mxu0 0.0
        %2088 = vmatpush1.xpose.msra.mxu0 0.0
        %2089 = vmatprep.subr.mxu0 0.0
        %2090 = vmatpush1.xpose.msra.mxu0 0.0
        %2091 = vmatprep.subr.mxu0 0.0
        %2092 = vmatpush1.xpose.msra.mxu0 0.0
        %2093 = vmatprep.subr.mxu0 0.0
        %2094 = vmatpush1.xpose.msra.mxu0 0.0
        %2095 = vmatprep.subr.mxu0 0.0
        %2096 = vmatpush1.xpose.msra.mxu0 0.0
        %2097 = vmatprep.subr.mxu0 0.0
        %2098 = vmatpush1.xpose.msra.mxu0 0.0
        %2099 = vmatprep.subr.mxu0 0.0
        %2100 = vmatpush1.xpose.msra.mxu0 0.0
        %2101 = vmatprep.subr.mxu0 0.0
        %2102 = vmatpush1.xpose.msra.mxu0 0.0
        %2103 = vmatprep.subr.mxu0 0.0
        %2104 = vmatpush1.xpose.msra.mxu0 0.0
        %2105 = vmatprep.subr.mxu0 0.0
        %2106 = vmatpush1.xpose.msra.mxu0 0.0
        %2107 = vmatprep.subr.mxu0 0.0
        %2108 = vmatpush1.xpose.msra.mxu0 0.0
        %2109 = vmatprep.subr.mxu0 0.0
        %2110 = vmatpush1.xpose.msra.mxu0 0.0
        %2111 = vmatprep.subr.mxu0 0.0
        %2112 = vmatpush1.xpose.msra.mxu0 0.0
        %2113 = vmatprep.subr.mxu0 0.0
        %2114 = vmatpush1.xpose.msra.mxu0 0.0
        %2115 = vmatprep.subr.mxu0 0.0
        %2116 = vmatpush1.xpose.msra.mxu0 0.0
        %2117 = vmatprep.subr.mxu0 0.0
        %2118 = vmatpush1.xpose.msra.mxu0 0.0
        %2119 = vmatprep.subr.mxu0 0.0
        %2120 = vmatpush1.xpose.msra.mxu0 0.0
        %2121 = vmatprep.subr.mxu0 0.0
        %2122 = vmatpush1.xpose.msra.mxu0 0.0
        %2123 = vmatprep.subr.mxu0 0.0
        %2124 = vmatpush1.xpose.msra.mxu0 0.0
        %2125 = vmatprep.mubr.f32.mxu0 0.0
        %2126 = vmatmul.mubr.f32.gmra.mrb[0].mxu0 %v2047
        %v2127 = vpop.f32.mrb[0].mxu0
        %v2128 = vadd.f32 %v2044, %v2127
        %v2129 = vpop.f32.mrb[0].mxu0
        %2130 = vdwg.mxu0
        %2131 = vst.msk [vmem:[%s528] sm:$0xff] %vm541, %v2128
        %s2132 = sand.u32 %s287, 1
        %s2133 = scalar_lea.sflag [#allocation4], %s2132
        %s2134 = sand.u32 %s287, 1
        %s2135 = smul.addr %s2134, 8
        %s2136 = scalar_lea.vmem [#allocation14], %s2135
        // Predicated region
        $region93: #{tpu_custom_call.1} parent=63 // pred_check
          %p2137 = pneg %p297
        $region94: #{tpu_custom_call.1} parent=63 // pred_check_branch
          %2139 = sbr.rel (%p2137) target = $region96
        $region95: #{tpu_custom_call.1} parent=63 // pred_region
          %s2141 = ssub.s32 128, 128
          %2142 = vsyncadd %s2133, %s2141
          %s2143 = smul.addr %s33, 128
          %s2144 = scalar_lea.hbm %s11, %s2143
          %s2146 = sshll.u32 %s2136, 4
          %s2147 = int_to_ptr.vmem [resolvable:$true] %s2146
          %2149 = dma.vmem_to_hbm [thread:$0]  %s2147, 128, %s2144, %s2133
        $region96: #{tpu_custom_call.1} parent=63 // pred_fallthru
          _
      $region64: #{tpu_custom_call.1} parent=5 // pred_fallthru
        _
      %p2150 = scmp.le.s32.totalorder 2, %s28
      // Predicated region
      $region97: #{tpu_custom_call.1} parent=5 // pred_check
        %p2151 = pneg %p2150
      $region98: #{tpu_custom_call.1} parent=5 // pred_check_branch
        %2153 = sbr.rel (%p2151) target = $region100
      $region99: #{tpu_custom_call.1} parent=5 // pred_region
        %s2154 = ssub.s32 %s28, 2
        // Predicated region
        $region101: #{tpu_custom_call.1} parent=99 // pred_check
          %p2155 = pneg %p303
        $region102: #{tpu_custom_call.1} parent=99 // pred_check_branch
          %2157 = sbr.rel (%p2155) target = $region104
        $region103: #{tpu_custom_call.1} parent=99 // pred_region
          %s2158 = sand.u32 %s288, 1
          %s2159 = scalar_lea.sflag [#allocation4], %s2158
          %s2160 = sand.u32 %s288, 1
          %s2161 = smul.addr %s2160, 8
          %s2162 = scalar_lea.vmem [#allocation14], %s2161
          %2163 = dma.done %s2159, 128
        $region104: #{tpu_custom_call.1} parent=99 // pred_fallthru
          _
      $region100: #{tpu_custom_call.1} parent=5 // pred_fallthru
        _
    $region6: #{tpu_custom_call.1} parent=1 // loop_footer
      %s32 = sadd.s32 1, %s28
    $region7: #{tpu_custom_call.1} parent=1 // loop_footer_branch
      %27 = sbr.rel target = $region3
    $region8: #{tpu_custom_call.1} parent=1 // loop_exit
      _
    %2164 = vsyncpa [#allocation3], 1
    %s2165 = scalar_lea.sflag [#allocation3], 1
    %2166 = vsyncpa %s2165, 1
    %2167 = vsyncpa [#allocation6], 1
    %s2168 = scalar_lea.sflag [#allocation6], 1
    %2169 = vsyncpa %s2168, 1
    %2170 = vsyncpa [#allocation9], 1
    %2171 = vsyncpa [#allocation12], 1
    %2172 = vsyncpa [#allocation4], 1
    %s2173 = scalar_lea.sflag [#allocation4], 1
    %2174 = vsyncpa %s2173, 1

</llo_original>
